<compile_context>
chip_gen: v7x
topology: tpu7x:2x2x1
jax: 0.10.0
libtpu: 0.0.40
codegen_flags: <defaults>
</compile_context>

<pallas_src>
import math
from functools import partial

import jax
import jax.numpy as jnp
import numpy as np
from jax.experimental import pallas as pl
from jax.experimental.pallas import tpu as pltpu

EPS = 1e-5  # nn.LayerNorm default eps


def _layernorm(x, gamma, beta):
    mean = jnp.mean(x, axis=-1, keepdims=True)
    var = jnp.mean(jnp.square(x - mean), axis=-1, keepdims=True)
    return (x - mean) * jax.lax.rsqrt(var + EPS) * gamma + beta


def hnca_kernel(num_layers,
                hi_ref,     # (Bt*L, E) f32   query-side tokens of this block
                lo_ref,     # (Bt*S, E) f32   key/value-side tokens of this block
                rows_ref,   # (16, E)  f32    pos, b1, b2, gamma, beta, bq*, bv*, bo*
                wm_ref,     # (2+2nl, E, E) bf16: conv1^T, conv2^T, Wq0s, Wq1s, Wo0, Wo1
                wv_ref,     # (E, nl*E) bf16  [Wv0 | Wv1]
                wkT_ref,    # (nl*E, E) bf16  [Wk0^T ; Wk1^T]
                pscat_ref,  # (Bt*S, C) bf16  0/1 column-replication (token -> (b,h,t) column)
                prep_ref,   # (C, Bt*S) bf16  0/1 row-replication    ((b,h,t) row -> token)
                hm_ref,     # (nl*E, C) f32   head indicator for KBD
                hmt2_ref,   # (C, nl*E) f32   head indicator for VBD / softmax denominator
                nmask_ref,  # (Bt*L, C) f32   0 within batch element, -1e30 across
                o_ref):     # (Bt*L, E) f32
    f32, bf16 = jnp.float32, jnp.bfloat16
    E = hi_ref.shape[1]
    nl = num_layers

    def mm(a, b):  # bf16 operands, f32 accumulation, single MXU pass
        return jnp.dot(a.astype(bf16), b.astype(bf16), preferred_element_type=f32)

    R = rows_ref[...]
    pos, b1, b2 = R[0:1], R[1:2], R[2:3]
    gamma, beta = R[3:4], R[4:5]

    # positional encoding + "conv" (dense center tap) + relu
    hr = jnp.maximum(mm(hi_ref[...] + pos, wm_ref[0]) + b1, 0.0)     # (Bt*L, E)
    lr = jnp.maximum(mm(lo_ref[...] + pos, wm_ref[1]) + b2, 0.0)     # (Bt*S, E)

    # ---- hoisted for BOTH layers (lr is layer-invariant) --------------------
    # K of both layers, feature-major:  kT[l*E+e, tok] = k_l[tok, e]
    kT = mm(wkT_ref[...], lr.T)                                      # (nl*E, Bt*S)
    # Block-diagonal score operand: KBD[l*E+e, c] = k_l[src(c), e] * [e in head(c)]
    kbd = (mm(kT, pscat_ref[...]) * hm_ref[...]).astype(bf16)        # (nl*E, C)
    # V of both layers, replicated per (batch, head, token) row and head-masked:
    lr_rep = mm(prep_ref[...], lr)                                   # (C, E)
    HMT2 = hmt2_ref[...]
    vbd = (mm(lr_rep, wv_ref[...]) * HMT2).astype(bf16)              # (C, nl*E)
    hmt_den = HMT2[:, 0:E].astype(bf16)                              # (C, E) denom indicator
    nmask = nmask_ref[...]                                           # (Bt*L, C)

    x = hr
    for l in range(nl):                       # static unroll (2 layers)
        xn = _layernorm(x, gamma, beta)
        # Q projection (1/sqrt(hd) folded into weights + bias host-side)
        q = mm(xn, wm_ref[2 + l]) + R[5 + l:6 + l]                   # (Bt*L, E)
        # All heads' scores in ONE lane-dense GEMM (N = Bt*H*S = 256); the -1e30 mask
        # kills cross-batch columns exactly.
        s = mm(q, kbd[l * E:(l + 1) * E, :]) + nmask                 # (Bt*L, C)
        # Row max is constant over the keys of every head -> cancels in softmax.
        # (A per-head max would only matter for extreme inter-head score ranges.)
        s = s - jnp.max(s, axis=-1, keepdims=True)
        p = jnp.exp(s).astype(bf16)
        den = mm(p, hmt_den)                  # per-head denom, broadcast over its hd lanes
        ctx = mm(p, vbd[:, l * E:(l + 1) * E]) / den                 # exact divide
        ctx = ctx + R[5 + nl + l:6 + nl + l]                         # + V bias (sum p == 1)
        out = mm(ctx, wm_ref[2 + nl + l]) + R[5 + 2 * nl + l:6 + 2 * nl + l]
        x = _layernorm(out, gamma, beta)      # post-MHA norm; next iter re-norms (as module)

    o_ref[...] = x


def hnca_forward(high, low, packed, *, block_batch, num_layers=2):
    """high/low: (B, L, E) / (B, S, E) batches of independent problems."""
    B, L, E = high.shape
    S = low.shape[1]
    Bt = block_batch
    assert B % Bt == 0, "batch must be a multiple of the per-block batch tile"
    hi2 = high.reshape(B * L, E)              # fold batch into rows (no in-kernel reshape)
    lo2 = low.reshape(B * S, E)
    pk = packed

    def full(arr):                            # whole-array (constant) spec for weight slabs
        # TODO(synk): for production embed dims, use memory_space=pl.ANY + one explicit
        # pltpu.make_async_copy into VMEM scratch so constants are not double-buffered.
        return pl.BlockSpec(arr.shape, lambda b, _n=arr.ndim: (0,) * _n)

    out2 = pl.pallas_call(
        partial(hnca_kernel, num_layers),
        out_shape=jax.ShapeDtypeStruct((B * L, E), jnp.float32),
        grid=(B // Bt,),
        in_specs=[
            pl.BlockSpec((Bt * L, E), lambda b: (b, 0)),      # high (Bt batch elems / step)
            pl.BlockSpec((Bt * S, E), lambda b: (b, 0)),      # low
            full(pk['rows']), full(pk['wm']), full(pk['wv']), full(pk['wkT']),
            full(pk['pscat']), full(pk['prep']), full(pk['hm']),
            full(pk['hmt2']), full(pk['nmask']),
        ],
        out_specs=pl.BlockSpec((Bt * L, E), lambda b: (b, 0)),
        compiler_params=pltpu.CompilerParams(
            dimension_semantics=("parallel",)),               # >=2 steps -> both v7x TCs
    )(hi2, lo2, pk['rows'], pk['wm'], pk['wv'], pk['wkT'],
      pk['pscat'], pk['prep'], pk['hm'], pk['hmt2'], pk['nmask'])
    return out2.reshape(B, L, E)


def pack_params(p, *, embed_dim, num_heads, block_batch, q_len, kv_len, num_layers=2):
    """Host-side packing: fused weights + structural 0/1 indicator constants."""
    E, H, nl = embed_dim, num_heads, num_layers
    hd = E // H
    Bt, L, S = block_batch, q_len, kv_len
    C = Bt * H * S
    scale = 1.0 / math.sqrt(hd)
    f32, bf16 = jnp.float32, jnp.bfloat16

    # ---- bias / vector rows (padded to a sublane multiple) ----
    n_rows = 5 + 3 * nl
    rows = np.zeros((((n_rows + 7) // 8) * 8, E), np.float32)
    rows[0] = np.asarray(p['pos'][0]);   rows[1] = np.asarray(p['b1'][0])
    rows[2] = np.asarray(p['b2'][0]);    rows[3] = np.asarray(p['gamma'][0])
    rows[4] = np.asarray(p['beta'][0])

    wm = [np.asarray(p['w1t']), np.asarray(p['w2t'])]   # conv center taps (transposed)
    wq_list, wo_list, wv_list, wkT_list = [], [], [], []
    layer_p = [(p['inw0t'], p['inb0'], p['outw0t'], p['outb0']),
               (p['inw1t'], p['inb1'], p['outw1t'], p['outb1'])][:nl]
    for l, (inwt, inb, outwt, outb) in enumerate(layer_p):
        inwt, inb = np.asarray(inwt), np.asarray(inb)
        rows[5 + l] = inb[0, 0:E] * scale                 # Q bias (scale folded)
        rows[5 + nl + l] = inb[0, 2 * E:3 * E]            # V bias (added to context)
        rows[5 + 2 * nl + l] = np.asarray(outb)[0]        # out-proj bias
        # K bias dropped: constant score shift per head -> exact no-op under softmax
        wq_list.append(inwt[:, 0:E] * scale)
        wkT_list.append(inwt[:, E:2 * E].T)
        wv_list.append(inwt[:, 2 * E:3 * E])
        wo_list.append(np.asarray(outwt))
    wm = wm + wq_list + wo_list                           # [W1, W2, Wq0, Wq1, Wo0, Wo1]

    # ---- structural (data-independent) indicator constants ----
    c = np.arange(C)
    b_c = c // (H * S)                                    # batch element of column c
    h_c = (c // S) % H                                    # head of column c
    src = b_c * S + (c % S)                               # kv-token row feeding column c
    pscat = (np.arange(Bt * S)[:, None] == src[None, :]).astype(np.float32)   # (Bt*S, C)
    hmE = ((np.arange(E) // hd)[:, None] == h_c[None, :]).astype(np.float32)  # (E, C)
    nmask = np.where((np.arange(Bt * L)[:, None] // L) == b_c[None, :],
                     0.0, -1e30).astype(np.float32)                           # (Bt*L, C)

    return dict(
        rows=jnp.asarray(rows, f32),
        wm=jnp.asarray(np.stack(wm), bf16),                        # (2+2nl, E, E)
        wv=jnp.asarray(np.concatenate(wv_list, axis=1), bf16),     # (E, nl*E)
        wkT=jnp.asarray(np.concatenate(wkT_list, axis=0), bf16),   # (nl*E, E)
        pscat=jnp.asarray(pscat, bf16),                            # (Bt*S, C)
        prep=jnp.asarray(pscat.T, bf16),                           # (C, Bt*S)
        hm=jnp.asarray(np.tile(hmE, (nl, 1)), f32),                # (nl*E, C)
        hmt2=jnp.asarray(np.tile(hmE.T, (1, nl)), f32),            # (C, nl*E)
        nmask=jnp.asarray(nmask, f32),                             # (Bt*L, C)
    )


def init_params(key, E):
    ks = jax.random.split(key, 9)

    def w(k, shape, scale=0.1):
        return (scale * jax.random.normal(k, shape)).astype(jnp.float32)

    pos = w(ks[0], (1, E))
    conv1_w = w(ks[1], (E, E, 3, 3))     # full Conv2d weight; only center tap matters
    conv1_b = w(ks[2], (1, E))
    conv2_w = w(ks[3], (E, E, 3, 3))
    conv2_b = w(ks[4], (1, E))
    inw0 = w(ks[5], (3 * E, E))          # MHA in_proj_weight (xavier-like), bias = 0
    outw0 = w(ks[6], (E, E))
    inw1 = w(ks[7], (3 * E, E))
    outw1 = w(ks[8], (E, E))

    return dict(
        pos=pos,
        w1t=jnp.asarray(conv1_w[:, :, 1, 1].T),   # conv on 1x1 spatial == dense
        b1=conv1_b,
        w2t=jnp.asarray(conv2_w[:, :, 1, 1].T),
        b2=conv2_b,
        gamma=jnp.ones((1, E), jnp.float32),      # nn.LayerNorm default init
        beta=jnp.zeros((1, E), jnp.float32),
        inw0t=jnp.asarray(inw0.T), inb0=jnp.zeros((1, 3 * E), jnp.float32),
        outw0t=jnp.asarray(outw0.T), outb0=jnp.zeros((1, E), jnp.float32),
        inw1t=jnp.asarray(inw1.T), inb1=jnp.zeros((1, 3 * E), jnp.float32),
        outw1t=jnp.asarray(outw1.T), outb1=jnp.zeros((1, E), jnp.float32),
    )


def reference(high, low, p, num_heads):
    """Pure-JAX mirror of the PyTorch forward (eval mode), per problem."""
    E = high.shape[1]
    hd = E // num_heads
    scale = 1.0 / math.sqrt(hd)
    hr = jnp.maximum((high + p['pos']) @ p['w1t'] + p['b1'], 0.0)
    lr = jnp.maximum((low + p['pos']) @ p['w2t'] + p['b2'], 0.0)

    def mha(x, kv, inwt, inb, outwt, outb):
        q = x @ inwt[:, :E] + inb[:, :E]
        k = kv @ inwt[:, E:2 * E] + inb[:, E:2 * E]
        v = kv @ inwt[:, 2 * E:] + inb[:, 2 * E:]
        L, S = x.shape[0], kv.shape[0]
        qh = q.reshape(L, num_heads, hd).transpose(1, 0, 2) * scale
        kh = k.reshape(S, num_heads, hd).transpose(1, 0, 2)
        vh = v.reshape(S, num_heads, hd).transpose(1, 0, 2)
        s = jnp.einsum('hld,hsd->hls', qh, kh)
        pr = jax.nn.softmax(s, axis=-1)
        o = jnp.einsum('hls,hsd->hld', pr, vh).transpose(1, 0, 2).reshape(L, E)
        return o @ outwt + outb

    x = hr
    for (inwt, inb, outwt, outb) in (
            (p['inw0t'], p['inb0'], p['outw0t'], p['outb0']),
            (p['inw1t'], p['inb1'], p['outw1t'], p['outb1'])):
        x = _layernorm(x, p['gamma'], p['beta'])
        x = mha(x, lr, inwt, inb, outwt, outb)
        x = _layernorm(x, p['gamma'], p['beta'])   # dropout identity in eval
    return x


if __name__ == "__main__":
    key = jax.random.PRNGKey(0)
    B = 8                 # independent (high, low) problems
    Bt = 4                # batch elements folded per block -> grid=(2,) (>=2 steps for v7x)
    E, H = 32, 8          # embed_dim, num_heads
    L, S = 8, 8           # query tokens, key/value tokens
    k1, k2, k3 = jax.random.split(key, 3)
    high = jax.random.normal(k1, (B, L, E), jnp.float32)
    low = jax.random.normal(k2, (B, S, E), jnp.float32)
    params = init_params(k3, E)
    packed = pack_params(params, embed_dim=E, num_heads=H, block_batch=Bt,
                         q_len=L, kv_len=S)

    out = hnca_forward(high, low, packed, block_batch=Bt)
    jax.block_until_ready(out)

    ref = jax.vmap(lambda h, l: reference(h, l, params, H))(high, low)
    assert out.shape == (B, L, E)
    # bf16 MXU operands vs an all-f32 JAX reference, amplified by the trailing LayerNorms.
    np.testing.assert_allclose(np.asarray(out), np.asarray(ref),
                               atol=2e-2, rtol=2e-2)
    print("KERNEL_OK")
</pallas_src>

<mosaic_0001>
module attributes {stable_mosaic.version = 11 : i64} {
  func.func @hnca_kernel(%arg0: i32, %arg1: memref<32x32xf32, #tpu.memory_space<vmem>>, %arg2: memref<32x32xf32, #tpu.memory_space<vmem>>, %arg3: memref<16x32xf32, #tpu.memory_space<vmem>>, %arg4: memref<6x32x32xbf16, #tpu.memory_space<vmem>>, %arg5: memref<32x64xbf16, #tpu.memory_space<vmem>>, %arg6: memref<64x32xbf16, #tpu.memory_space<vmem>>, %arg7: memref<32x256xbf16, #tpu.memory_space<vmem>>, %arg8: memref<256x32xbf16, #tpu.memory_space<vmem>>, %arg9: memref<64x256xf32, #tpu.memory_space<vmem>>, %arg10: memref<256x64xf32, #tpu.memory_space<vmem>>, %arg11: memref<32x256xf32, #tpu.memory_space<vmem>>, %arg12: memref<32x32xf32, #tpu.memory_space<vmem>>) attributes {dimension_semantics = [#tpu.dimension_semantics<parallel>], iteration_bounds = array<i64: 2>, scalar_prefetch = 0 : i64, scratch_operands = 0 : i64, tpu.core_type = #tpu.core_type<tc>, window_params = [{transform_indices = @transform_0, window_bounds = array<i64: 32, 32>}, {transform_indices = @transform_1, window_bounds = array<i64: 32, 32>}, {pipeline_mode = #tpu.pipeline_mode<synchronous>, transform_indices = @transform_2, window_bounds = array<i64: 16, 32>}, {pipeline_mode = #tpu.pipeline_mode<synchronous>, transform_indices = @transform_3, window_bounds = array<i64: 6, 32, 32>}, {pipeline_mode = #tpu.pipeline_mode<synchronous>, transform_indices = @transform_4, window_bounds = array<i64: 32, 64>}, {pipeline_mode = #tpu.pipeline_mode<synchronous>, transform_indices = @transform_5, window_bounds = array<i64: 64, 32>}, {pipeline_mode = #tpu.pipeline_mode<synchronous>, transform_indices = @transform_6, window_bounds = array<i64: 32, 256>}, {pipeline_mode = #tpu.pipeline_mode<synchronous>, transform_indices = @transform_7, window_bounds = array<i64: 256, 32>}, {pipeline_mode = #tpu.pipeline_mode<synchronous>, transform_indices = @transform_8, window_bounds = array<i64: 64, 256>}, {pipeline_mode = #tpu.pipeline_mode<synchronous>, transform_indices = @transform_9, window_bounds = array<i64: 256, 64>}, {pipeline_mode = #tpu.pipeline_mode<synchronous>, transform_indices = @transform_10, window_bounds = array<i64: 32, 256>}, {transform_indices = @transform_11, window_bounds = array<i64: 32, 32>}]} {
    %c0 = arith.constant 0 : index
    %c0_0 = arith.constant 0 : index
    %0 = vector.load %arg3[%c0, %c0_0] : memref<16x32xf32, #tpu.memory_space<vmem>>, vector<16x32xf32>
    %1 = vector.extract_strided_slice %0 {offsets = [0, 0], sizes = [1, 32], strides = [1, 1]} : vector<16x32xf32> to vector<1x32xf32>
    %2 = vector.extract_strided_slice %0 {offsets = [1, 0], sizes = [1, 32], strides = [1, 1]} : vector<16x32xf32> to vector<1x32xf32>
    %3 = vector.extract_strided_slice %0 {offsets = [2, 0], sizes = [1, 32], strides = [1, 1]} : vector<16x32xf32> to vector<1x32xf32>
    %4 = vector.extract_strided_slice %0 {offsets = [3, 0], sizes = [1, 32], strides = [1, 1]} : vector<16x32xf32> to vector<1x32xf32>
    %5 = vector.extract_strided_slice %0 {offsets = [4, 0], sizes = [1, 32], strides = [1, 1]} : vector<16x32xf32> to vector<1x32xf32>
    %c0_1 = arith.constant 0 : index
    %c0_2 = arith.constant 0 : index
    %6 = vector.load %arg1[%c0_1, %c0_2] : memref<32x32xf32, #tpu.memory_space<vmem>>, vector<32x32xf32>
    %7 = vector.broadcast %1 : vector<1x32xf32> to vector<32x32xf32>
    %8 = arith.addf %6, %7 : vector<32x32xf32>
    %c0_3 = arith.constant 0 : index
    %c0_4 = arith.constant 0 : index
    %c0_5 = arith.constant 0 : index
    %9 = vector.load %arg4[%c0_3, %c0_4, %c0_5] : memref<6x32x32xbf16, #tpu.memory_space<vmem>>, vector<1x32x32xbf16>
    %10 = vector.shape_cast %9 : vector<1x32x32xbf16> to vector<32x32xbf16>
    %11 = arith.truncf %8 : vector<32x32xf32> to vector<32x32xbf16>
    %cst = arith.constant dense<0.000000e+00> : vector<32x32xf32>
    %12 = tpu.matmul %11, %10, %cst {dimension_numbers = #tpu.dot_dimension_numbers<[1], [0], [0], [1], [0, 0, 1, 1], [], []>} : vector<32x32xbf16>, vector<32x32xbf16>, vector<32x32xf32> -> vector<32x32xf32>
    %13 = vector.broadcast %2 : vector<1x32xf32> to vector<32x32xf32>
    %14 = arith.addf %12, %13 : vector<32x32xf32>
    %cst_6 = arith.constant 0.000000e+00 : f32
    %15 = vector.broadcast %cst_6 : f32 to vector<32x32xf32>
    %16 = arith.maximumf %14, %15 : vector<32x32xf32>
    %c0_7 = arith.constant 0 : index
    %c0_8 = arith.constant 0 : index
    %17 = vector.load %arg2[%c0_7, %c0_8] : memref<32x32xf32, #tpu.memory_space<vmem>>, vector<32x32xf32>
    %18 = vector.broadcast %1 : vector<1x32xf32> to vector<32x32xf32>
    %19 = arith.addf %17, %18 : vector<32x32xf32>
    %c1 = arith.constant 1 : index
    %c0_9 = arith.constant 0 : index
    %c0_10 = arith.constant 0 : index
    %20 = vector.load %arg4[%c1, %c0_9, %c0_10] : memref<6x32x32xbf16, #tpu.memory_space<vmem>>, vector<1x32x32xbf16>
    %21 = vector.shape_cast %20 : vector<1x32x32xbf16> to vector<32x32xbf16>
    %22 = arith.truncf %19 : vector<32x32xf32> to vector<32x32xbf16>
    %cst_11 = arith.constant dense<0.000000e+00> : vector<32x32xf32>
    %23 = tpu.matmul %22, %21, %cst_11 {dimension_numbers = #tpu.dot_dimension_numbers<[1], [0], [0], [1], [0, 0, 1, 1], [], []>} : vector<32x32xbf16>, vector<32x32xbf16>, vector<32x32xf32> -> vector<32x32xf32>
    %24 = vector.broadcast %3 : vector<1x32xf32> to vector<32x32xf32>
    %25 = arith.addf %23, %24 : vector<32x32xf32>
    %cst_12 = arith.constant 0.000000e+00 : f32
    %26 = vector.broadcast %cst_12 : f32 to vector<32x32xf32>
    %27 = arith.maximumf %25, %26 : vector<32x32xf32>
    %c0_13 = arith.constant 0 : index
    %c0_14 = arith.constant 0 : index
    %28 = vector.load %arg6[%c0_13, %c0_14] : memref<64x32xbf16, #tpu.memory_space<vmem>>, vector<64x32xbf16>
    %29 = tpu.transpose %27, [1, 0] : vector<32x32xf32> -> vector<32x32xf32>
    %30 = arith.truncf %29 : vector<32x32xf32> to vector<32x32xbf16>
    %cst_15 = arith.constant dense<0.000000e+00> : vector<64x32xf32>
    %31 = tpu.matmul %28, %30, %cst_15 {dimension_numbers = #tpu.dot_dimension_numbers<[1], [0], [0], [1], [0, 0, 1, 1], [], []>} : vector<64x32xbf16>, vector<32x32xbf16>, vector<64x32xf32> -> vector<64x32xf32>
    %c0_16 = arith.constant 0 : index
    %c0_17 = arith.constant 0 : index
    %32 = vector.load %arg7[%c0_16, %c0_17] : memref<32x256xbf16, #tpu.memory_space<vmem>>, vector<32x256xbf16>
    %33 = arith.truncf %31 : vector<64x32xf32> to vector<64x32xbf16>
    %cst_18 = arith.constant dense<0.000000e+00> : vector<64x256xf32>
    %34 = tpu.matmul %33, %32, %cst_18 {dimension_numbers = #tpu.dot_dimension_numbers<[1], [0], [0], [1], [0, 0, 1, 1], [], []>} : vector<64x32xbf16>, vector<32x256xbf16>, vector<64x256xf32> -> vector<64x256xf32>
    %c0_19 = arith.constant 0 : index
    %c0_20 = arith.constant 0 : index
    %35 = vector.load %arg9[%c0_19, %c0_20] : memref<64x256xf32, #tpu.memory_space<vmem>>, vector<64x256xf32>
    %36 = arith.mulf %34, %35 : vector<64x256xf32>
    %37 = arith.truncf %36 : vector<64x256xf32> to vector<64x256xbf16>
    %c0_21 = arith.constant 0 : index
    %c0_22 = arith.constant 0 : index
    %38 = vector.load %arg8[%c0_21, %c0_22] : memref<256x32xbf16, #tpu.memory_space<vmem>>, vector<256x32xbf16>
    %39 = arith.truncf %27 : vector<32x32xf32> to vector<32x32xbf16>
    %cst_23 = arith.constant dense<0.000000e+00> : vector<256x32xf32>
    %40 = tpu.matmul %38, %39, %cst_23 {dimension_numbers = #tpu.dot_dimension_numbers<[1], [0], [0], [1], [0, 0, 1, 1], [], []>} : vector<256x32xbf16>, vector<32x32xbf16>, vector<256x32xf32> -> vector<256x32xf32>
    %c0_24 = arith.constant 0 : index
    %c0_25 = arith.constant 0 : index
    %41 = vector.load %arg10[%c0_24, %c0_25] : memref<256x64xf32, #tpu.memory_space<vmem>>, vector<256x64xf32>
    %c0_26 = arith.constant 0 : index
    %c0_27 = arith.constant 0 : index
    %42 = vector.load %arg5[%c0_26, %c0_27] : memref<32x64xbf16, #tpu.memory_space<vmem>>, vector<32x64xbf16>
    %43 = arith.truncf %40 : vector<256x32xf32> to vector<256x32xbf16>
    %cst_28 = arith.constant dense<0.000000e+00> : vector<256x64xf32>
    %44 = tpu.matmul %43, %42, %cst_28 {dimension_numbers = #tpu.dot_dimension_numbers<[1], [0], [0], [1], [0, 0, 1, 1], [], []>} : vector<256x32xbf16>, vector<32x64xbf16>, vector<256x64xf32> -> vector<256x64xf32>
    %45 = arith.mulf %44, %41 : vector<256x64xf32>
    %46 = arith.truncf %45 : vector<256x64xf32> to vector<256x64xbf16>
    %47 = vector.extract_strided_slice %41 {offsets = [0, 0], sizes = [256, 32], strides = [1, 1]} : vector<256x64xf32> to vector<256x32xf32>
    %48 = arith.truncf %47 : vector<256x32xf32> to vector<256x32xbf16>
    %c0_29 = arith.constant 0 : index
    %c0_30 = arith.constant 0 : index
    %49 = vector.load %arg11[%c0_29, %c0_30] : memref<32x256xf32, #tpu.memory_space<vmem>>, vector<32x256xf32>
    %cst_31 = arith.constant dense<0.000000e+00> : vector<32xf32>
    %50 = vector.multi_reduction <add>, %16, %cst_31 [1] : vector<32x32xf32> to vector<32xf32>
    %51 = vector.shape_cast %50 : vector<32xf32> to vector<32x1xf32>
    %cst_32 = arith.constant 3.200000e+01 : f32
    %52 = vector.broadcast %cst_32 : f32 to vector<32x1xf32>
    %53 = arith.divf %51, %52 : vector<32x1xf32>
    %54 = vector.broadcast %53 : vector<32x1xf32> to vector<32x32xf32>
    %55 = arith.subf %16, %54 : vector<32x32xf32>
    %56 = arith.mulf %55, %55 : vector<32x32xf32>
    %cst_33 = arith.constant dense<0.000000e+00> : vector<32xf32>
    %57 = vector.multi_reduction <add>, %56, %cst_33 [1] : vector<32x32xf32> to vector<32xf32>
    %58 = vector.shape_cast %57 : vector<32xf32> to vector<32x1xf32>
    %cst_34 = arith.constant 3.200000e+01 : f32
    %59 = vector.broadcast %cst_34 : f32 to vector<32x1xf32>
    %60 = arith.divf %58, %59 : vector<32x1xf32>
    %61 = vector.broadcast %53 : vector<32x1xf32> to vector<32x32xf32>
    %62 = arith.subf %16, %61 : vector<32x32xf32>
    %cst_35 = arith.constant 9.99999974E-6 : f32
    %63 = vector.broadcast %cst_35 : f32 to vector<32x1xf32>
    %64 = arith.addf %60, %63 : vector<32x1xf32>
    %65 = math.rsqrt %64 : vector<32x1xf32>
    %66 = vector.broadcast %65 : vector<32x1xf32> to vector<32x32xf32>
    %67 = arith.mulf %62, %66 : vector<32x32xf32>
    %68 = vector.broadcast %4 : vector<1x32xf32> to vector<32x32xf32>
    %69 = arith.mulf %67, %68 : vector<32x32xf32>
    %70 = vector.broadcast %5 : vector<1x32xf32> to vector<32x32xf32>
    %71 = arith.addf %69, %70 : vector<32x32xf32>
    %c2 = arith.constant 2 : index
    %c0_36 = arith.constant 0 : index
    %c0_37 = arith.constant 0 : index
    %72 = vector.load %arg4[%c2, %c0_36, %c0_37] : memref<6x32x32xbf16, #tpu.memory_space<vmem>>, vector<1x32x32xbf16>
    %73 = vector.shape_cast %72 : vector<1x32x32xbf16> to vector<32x32xbf16>
    %74 = arith.truncf %71 : vector<32x32xf32> to vector<32x32xbf16>
    %cst_38 = arith.constant dense<0.000000e+00> : vector<32x32xf32>
    %75 = tpu.matmul %74, %73, %cst_38 {dimension_numbers = #tpu.dot_dimension_numbers<[1], [0], [0], [1], [0, 0, 1, 1], [], []>} : vector<32x32xbf16>, vector<32x32xbf16>, vector<32x32xf32> -> vector<32x32xf32>
    %76 = vector.extract_strided_slice %0 {offsets = [5, 0], sizes = [1, 32], strides = [1, 1]} : vector<16x32xf32> to vector<1x32xf32>
    %77 = vector.broadcast %76 : vector<1x32xf32> to vector<32x32xf32>
    %78 = arith.addf %75, %77 : vector<32x32xf32>
    %79 = vector.extract_strided_slice %37 {offsets = [0, 0], sizes = [32, 256], strides = [1, 1]} : vector<64x256xbf16> to vector<32x256xbf16>
    %80 = arith.truncf %78 : vector<32x32xf32> to vector<32x32xbf16>
    %cst_39 = arith.constant dense<0.000000e+00> : vector<32x256xf32>
    %81 = tpu.matmul %80, %79, %cst_39 {dimension_numbers = #tpu.dot_dimension_numbers<[1], [0], [0], [1], [0, 0, 1, 1], [], []>} : vector<32x32xbf16>, vector<32x256xbf16>, vector<32x256xf32> -> vector<32x256xf32>
    %82 = arith.addf %81, %49 : vector<32x256xf32>
    %cst_40 = arith.constant dense<0xFF800000> : vector<32xf32>
    %83 = vector.multi_reduction <maximumf>, %82, %cst_40 [1] : vector<32x256xf32> to vector<32xf32>
    %84 = vector.shape_cast %83 : vector<32xf32> to vector<32x1xf32>
    %85 = vector.broadcast %84 : vector<32x1xf32> to vector<32x256xf32>
    %86 = arith.subf %82, %85 : vector<32x256xf32>
    %87 = math.exp %86 : vector<32x256xf32>
    %88 = arith.truncf %87 : vector<32x256xf32> to vector<32x256xbf16>
    %cst_41 = arith.constant dense<0.000000e+00> : vector<32x32xf32>
    %89 = tpu.matmul %88, %48, %cst_41 {dimension_numbers = #tpu.dot_dimension_numbers<[1], [0], [0], [1], [0, 0, 1, 1], [], []>} : vector<32x256xbf16>, vector<256x32xbf16>, vector<32x32xf32> -> vector<32x32xf32>
    %90 = vector.extract_strided_slice %46 {offsets = [0, 0], sizes = [256, 32], strides = [1, 1]} : vector<256x64xbf16> to vector<256x32xbf16>
    %cst_42 = arith.constant dense<0.000000e+00> : vector<32x32xf32>
    %91 = tpu.matmul %88, %90, %cst_42 {dimension_numbers = #tpu.dot_dimension_numbers<[1], [0], [0], [1], [0, 0, 1, 1], [], []>} : vector<32x256xbf16>, vector<256x32xbf16>, vector<32x32xf32> -> vector<32x32xf32>
    %92 = arith.divf %91, %89 : vector<32x32xf32>
    %93 = vector.extract_strided_slice %0 {offsets = [7, 0], sizes = [1, 32], strides = [1, 1]} : vector<16x32xf32> to vector<1x32xf32>
    %94 = vector.broadcast %93 : vector<1x32xf32> to vector<32x32xf32>
    %95 = arith.addf %92, %94 : vector<32x32xf32>
    %c4 = arith.constant 4 : index
    %c0_43 = arith.constant 0 : index
    %c0_44 = arith.constant 0 : index
    %96 = vector.load %arg4[%c4, %c0_43, %c0_44] : memref<6x32x32xbf16, #tpu.memory_space<vmem>>, vector<1x32x32xbf16>
    %97 = vector.shape_cast %96 : vector<1x32x32xbf16> to vector<32x32xbf16>
    %98 = arith.truncf %95 : vector<32x32xf32> to vector<32x32xbf16>
    %cst_45 = arith.constant dense<0.000000e+00> : vector<32x32xf32>
    %99 = tpu.matmul %98, %97, %cst_45 {dimension_numbers = #tpu.dot_dimension_numbers<[1], [0], [0], [1], [0, 0, 1, 1], [], []>} : vector<32x32xbf16>, vector<32x32xbf16>, vector<32x32xf32> -> vector<32x32xf32>
    %100 = vector.extract_strided_slice %0 {offsets = [9, 0], sizes = [1, 32], strides = [1, 1]} : vector<16x32xf32> to vector<1x32xf32>
    %101 = vector.broadcast %100 : vector<1x32xf32> to vector<32x32xf32>
    %102 = arith.addf %99, %101 : vector<32x32xf32>
    %cst_46 = arith.constant dense<0.000000e+00> : vector<32xf32>
    %103 = vector.multi_reduction <add>, %102, %cst_46 [1] : vector<32x32xf32> to vector<32xf32>
    %104 = vector.shape_cast %103 : vector<32xf32> to vector<32x1xf32>
    %cst_47 = arith.constant 3.200000e+01 : f32
    %105 = vector.broadcast %cst_47 : f32 to vector<32x1xf32>
    %106 = arith.divf %104, %105 : vector<32x1xf32>
    %107 = vector.broadcast %106 : vector<32x1xf32> to vector<32x32xf32>
    %108 = arith.subf %102, %107 : vector<32x32xf32>
    %109 = arith.mulf %108, %108 : vector<32x32xf32>
    %cst_48 = arith.constant dense<0.000000e+00> : vector<32xf32>
    %110 = vector.multi_reduction <add>, %109, %cst_48 [1] : vector<32x32xf32> to vector<32xf32>
    %111 = vector.shape_cast %110 : vector<32xf32> to vector<32x1xf32>
    %cst_49 = arith.constant 3.200000e+01 : f32
    %112 = vector.broadcast %cst_49 : f32 to vector<32x1xf32>
    %113 = arith.divf %111, %112 : vector<32x1xf32>
    %114 = vector.broadcast %106 : vector<32x1xf32> to vector<32x32xf32>
    %115 = arith.subf %102, %114 : vector<32x32xf32>
    %cst_50 = arith.constant 9.99999974E-6 : f32
    %116 = vector.broadcast %cst_50 : f32 to vector<32x1xf32>
    %117 = arith.addf %113, %116 : vector<32x1xf32>
    %118 = math.rsqrt %117 : vector<32x1xf32>
    %119 = vector.broadcast %118 : vector<32x1xf32> to vector<32x32xf32>
    %120 = arith.mulf %115, %119 : vector<32x32xf32>
    %121 = vector.broadcast %4 : vector<1x32xf32> to vector<32x32xf32>
    %122 = arith.mulf %120, %121 : vector<32x32xf32>
    %123 = vector.broadcast %5 : vector<1x32xf32> to vector<32x32xf32>
    %124 = arith.addf %122, %123 : vector<32x32xf32>
    %cst_51 = arith.constant dense<0.000000e+00> : vector<32xf32>
    %125 = vector.multi_reduction <add>, %124, %cst_51 [1] : vector<32x32xf32> to vector<32xf32>
    %126 = vector.shape_cast %125 : vector<32xf32> to vector<32x1xf32>
    %cst_52 = arith.constant 3.200000e+01 : f32
    %127 = vector.broadcast %cst_52 : f32 to vector<32x1xf32>
    %128 = arith.divf %126, %127 : vector<32x1xf32>
    %129 = vector.broadcast %128 : vector<32x1xf32> to vector<32x32xf32>
    %130 = arith.subf %124, %129 : vector<32x32xf32>
    %131 = arith.mulf %130, %130 : vector<32x32xf32>
    %cst_53 = arith.constant dense<0.000000e+00> : vector<32xf32>
    %132 = vector.multi_reduction <add>, %131, %cst_53 [1] : vector<32x32xf32> to vector<32xf32>
    %133 = vector.shape_cast %132 : vector<32xf32> to vector<32x1xf32>
    %cst_54 = arith.constant 3.200000e+01 : f32
    %134 = vector.broadcast %cst_54 : f32 to vector<32x1xf32>
    %135 = arith.divf %133, %134 : vector<32x1xf32>
    %136 = vector.broadcast %128 : vector<32x1xf32> to vector<32x32xf32>
    %137 = arith.subf %124, %136 : vector<32x32xf32>
    %cst_55 = arith.constant 9.99999974E-6 : f32
    %138 = vector.broadcast %cst_55 : f32 to vector<32x1xf32>
    %139 = arith.addf %135, %138 : vector<32x1xf32>
    %140 = math.rsqrt %139 : vector<32x1xf32>
    %141 = vector.broadcast %140 : vector<32x1xf32> to vector<32x32xf32>
    %142 = arith.mulf %137, %141 : vector<32x32xf32>
    %143 = vector.broadcast %4 : vector<1x32xf32> to vector<32x32xf32>
    %144 = arith.mulf %142, %143 : vector<32x32xf32>
    %145 = vector.broadcast %5 : vector<1x32xf32> to vector<32x32xf32>
    %146 = arith.addf %144, %145 : vector<32x32xf32>
    %c3 = arith.constant 3 : index
    %c0_56 = arith.constant 0 : index
    %c0_57 = arith.constant 0 : index
    %147 = vector.load %arg4[%c3, %c0_56, %c0_57] : memref<6x32x32xbf16, #tpu.memory_space<vmem>>, vector<1x32x32xbf16>
    %148 = vector.shape_cast %147 : vector<1x32x32xbf16> to vector<32x32xbf16>
    %149 = arith.truncf %146 : vector<32x32xf32> to vector<32x32xbf16>
    %cst_58 = arith.constant dense<0.000000e+00> : vector<32x32xf32>
    %150 = tpu.matmul %149, %148, %cst_58 {dimension_numbers = #tpu.dot_dimension_numbers<[1], [0], [0], [1], [0, 0, 1, 1], [], []>} : vector<32x32xbf16>, vector<32x32xbf16>, vector<32x32xf32> -> vector<32x32xf32>
    %151 = vector.extract_strided_slice %0 {offsets = [6, 0], sizes = [1, 32], strides = [1, 1]} : vector<16x32xf32> to vector<1x32xf32>
    %152 = vector.broadcast %151 : vector<1x32xf32> to vector<32x32xf32>
    %153 = arith.addf %150, %152 : vector<32x32xf32>
    %154 = vector.extract_strided_slice %37 {offsets = [32, 0], sizes = [32, 256], strides = [1, 1]} : vector<64x256xbf16> to vector<32x256xbf16>
    %155 = arith.truncf %153 : vector<32x32xf32> to vector<32x32xbf16>
    %cst_59 = arith.constant dense<0.000000e+00> : vector<32x256xf32>
    %156 = tpu.matmul %155, %154, %cst_59 {dimension_numbers = #tpu.dot_dimension_numbers<[1], [0], [0], [1], [0, 0, 1, 1], [], []>} : vector<32x32xbf16>, vector<32x256xbf16>, vector<32x256xf32> -> vector<32x256xf32>
    %157 = arith.addf %156, %49 : vector<32x256xf32>
    %cst_60 = arith.constant dense<0xFF800000> : vector<32xf32>
    %158 = vector.multi_reduction <maximumf>, %157, %cst_60 [1] : vector<32x256xf32> to vector<32xf32>
    %159 = vector.shape_cast %158 : vector<32xf32> to vector<32x1xf32>
    %160 = vector.broadcast %159 : vector<32x1xf32> to vector<32x256xf32>
    %161 = arith.subf %157, %160 : vector<32x256xf32>
    %162 = math.exp %161 : vector<32x256xf32>
    %163 = arith.truncf %162 : vector<32x256xf32> to vector<32x256xbf16>
    %cst_61 = arith.constant dense<0.000000e+00> : vector<32x32xf32>
    %164 = tpu.matmul %163, %48, %cst_61 {dimension_numbers = #tpu.dot_dimension_numbers<[1], [0], [0], [1], [0, 0, 1, 1], [], []>} : vector<32x256xbf16>, vector<256x32xbf16>, vector<32x32xf32> -> vector<32x32xf32>
    %165 = vector.extract_strided_slice %46 {offsets = [0, 32], sizes = [256, 32], strides = [1, 1]} : vector<256x64xbf16> to vector<256x32xbf16>
    %cst_62 = arith.constant dense<0.000000e+00> : vector<32x32xf32>
    %166 = tpu.matmul %163, %165, %cst_62 {dimension_numbers = #tpu.dot_dimension_numbers<[1], [0], [0], [1], [0, 0, 1, 1], [], []>} : vector<32x256xbf16>, vector<256x32xbf16>, vector<32x32xf32> -> vector<32x32xf32>
    %167 = arith.divf %166, %164 : vector<32x32xf32>
    %168 = vector.extract_strided_slice %0 {offsets = [8, 0], sizes = [1, 32], strides = [1, 1]} : vector<16x32xf32> to vector<1x32xf32>
    %169 = vector.broadcast %168 : vector<1x32xf32> to vector<32x32xf32>
    %170 = arith.addf %167, %169 : vector<32x32xf32>
    %c5 = arith.constant 5 : index
    %c0_63 = arith.constant 0 : index
    %c0_64 = arith.constant 0 : index
    %171 = vector.load %arg4[%c5, %c0_63, %c0_64] : memref<6x32x32xbf16, #tpu.memory_space<vmem>>, vector<1x32x32xbf16>
    %172 = vector.shape_cast %171 : vector<1x32x32xbf16> to vector<32x32xbf16>
    %173 = arith.truncf %170 : vector<32x32xf32> to vector<32x32xbf16>
    %cst_65 = arith.constant dense<0.000000e+00> : vector<32x32xf32>
    %174 = tpu.matmul %173, %172, %cst_65 {dimension_numbers = #tpu.dot_dimension_numbers<[1], [0], [0], [1], [0, 0, 1, 1], [], []>} : vector<32x32xbf16>, vector<32x32xbf16>, vector<32x32xf32> -> vector<32x32xf32>
    %175 = vector.extract_strided_slice %0 {offsets = [10, 0], sizes = [1, 32], strides = [1, 1]} : vector<16x32xf32> to vector<1x32xf32>
    %176 = vector.broadcast %175 : vector<1x32xf32> to vector<32x32xf32>
    %177 = arith.addf %174, %176 : vector<32x32xf32>
    %cst_66 = arith.constant dense<0.000000e+00> : vector<32xf32>
    %178 = vector.multi_reduction <add>, %177, %cst_66 [1] : vector<32x32xf32> to vector<32xf32>
    %179 = vector.shape_cast %178 : vector<32xf32> to vector<32x1xf32>
    %cst_67 = arith.constant 3.200000e+01 : f32
    %180 = vector.broadcast %cst_67 : f32 to vector<32x1xf32>
    %181 = arith.divf %179, %180 : vector<32x1xf32>
    %182 = vector.broadcast %181 : vector<32x1xf32> to vector<32x32xf32>
    %183 = arith.subf %177, %182 : vector<32x32xf32>
    %184 = arith.mulf %183, %183 : vector<32x32xf32>
    %cst_68 = arith.constant dense<0.000000e+00> : vector<32xf32>
    %185 = vector.multi_reduction <add>, %184, %cst_68 [1] : vector<32x32xf32> to vector<32xf32>
    %186 = vector.shape_cast %185 : vector<32xf32> to vector<32x1xf32>
    %cst_69 = arith.constant 3.200000e+01 : f32
    %187 = vector.broadcast %cst_69 : f32 to vector<32x1xf32>
    %188 = arith.divf %186, %187 : vector<32x1xf32>
    %189 = vector.broadcast %181 : vector<32x1xf32> to vector<32x32xf32>
    %190 = arith.subf %177, %189 : vector<32x32xf32>
    %cst_70 = arith.constant 9.99999974E-6 : f32
    %191 = vector.broadcast %cst_70 : f32 to vector<32x1xf32>
    %192 = arith.addf %188, %191 : vector<32x1xf32>
    %193 = math.rsqrt %192 : vector<32x1xf32>
    %194 = vector.broadcast %193 : vector<32x1xf32> to vector<32x32xf32>
    %195 = arith.mulf %190, %194 : vector<32x32xf32>
    %196 = vector.broadcast %4 : vector<1x32xf32> to vector<32x32xf32>
    %197 = arith.mulf %195, %196 : vector<32x32xf32>
    %198 = vector.broadcast %5 : vector<1x32xf32> to vector<32x32xf32>
    %199 = arith.addf %197, %198 : vector<32x32xf32>
    %c0_71 = arith.constant 0 : index
    %c0_72 = arith.constant 0 : index
    %200 = vector.load %arg12[%c0_71, %c0_72] : memref<32x32xf32, #tpu.memory_space<vmem>>, vector<32x32xf32>
    tpu.vector_store %arg12[%c0_71, %c0_72], %199 {strides = array<i32>} : memref<32x32xf32, #tpu.memory_space<vmem>>, vector<32x32xf32>,
    return
  }
  func.func @transform_0(%arg0: i32) -> (i32, i32) {
    %c0_i32 = arith.constant 0 : i32
    %c0_i32_0 = arith.constant 0 : i32
    return %arg0, %c0_i32 : i32, i32
  }
  func.func @transform_1(%arg0: i32) -> (i32, i32) {
    %c0_i32 = arith.constant 0 : i32
    %c0_i32_0 = arith.constant 0 : i32
    return %arg0, %c0_i32 : i32, i32
  }
  func.func @transform_2(%arg0: i32) -> (i32, i32) {
    %c0_i32 = arith.constant 0 : i32
    %c0_i32_0 = arith.constant 0 : i32
    %c0_i32_1 = arith.constant 0 : i32
    return %c0_i32, %c0_i32_0 : i32, i32
  }
  func.func @transform_3(%arg0: i32) -> (i32, i32, i32) {
    %c0_i32 = arith.constant 0 : i32
    %c0_i32_0 = arith.constant 0 : i32
    %c0_i32_1 = arith.constant 0 : i32
    %c0_i32_2 = arith.constant 0 : i32
    return %c0_i32, %c0_i32_0, %c0_i32_1 : i32, i32, i32
  }
  func.func @transform_4(%arg0: i32) -> (i32, i32) {
    %c0_i32 = arith.constant 0 : i32
    %c0_i32_0 = arith.constant 0 : i32
    %c0_i32_1 = arith.constant 0 : i32
    return %c0_i32, %c0_i32_0 : i32, i32
  }
  func.func @transform_5(%arg0: i32) -> (i32, i32) {
    %c0_i32 = arith.constant 0 : i32
    %c0_i32_0 = arith.constant 0 : i32
    %c0_i32_1 = arith.constant 0 : i32
    return %c0_i32, %c0_i32_0 : i32, i32
  }
  func.func @transform_6(%arg0: i32) -> (i32, i32) {
    %c0_i32 = arith.constant 0 : i32
    %c0_i32_0 = arith.constant 0 : i32
    %c0_i32_1 = arith.constant 0 : i32
    return %c0_i32, %c0_i32_0 : i32, i32
  }
  func.func @transform_7(%arg0: i32) -> (i32, i32) {
    %c0_i32 = arith.constant 0 : i32
    %c0_i32_0 = arith.constant 0 : i32
    %c0_i32_1 = arith.constant 0 : i32
    return %c0_i32, %c0_i32_0 : i32, i32
  }
  func.func @transform_8(%arg0: i32) -> (i32, i32) {
    %c0_i32 = arith.constant 0 : i32
    %c0_i32_0 = arith.constant 0 : i32
    %c0_i32_1 = arith.constant 0 : i32
    return %c0_i32, %c0_i32_0 : i32, i32
  }
  func.func @transform_9(%arg0: i32) -> (i32, i32) {
    %c0_i32 = arith.constant 0 : i32
    %c0_i32_0 = arith.constant 0 : i32
    %c0_i32_1 = arith.constant 0 : i32
    return %c0_i32, %c0_i32_0 : i32, i32
  }
  func.func @transform_10(%arg0: i32) -> (i32, i32) {
    %c0_i32 = arith.constant 0 : i32
    %c0_i32_0 = arith.constant 0 : i32
    %c0_i32_1 = arith.constant 0 : i32
    return %c0_i32, %c0_i32_0 : i32, i32
  }
  func.func @transform_11(%arg0: i32) -> (i32, i32) {
    %c0_i32 = arith.constant 0 : i32
    %c0_i32_0 = arith.constant 0 : i32
    return %arg0, %c0_i32 : i32, i32
  }
}

</mosaic_0001>

<llo_original>
// kernel: tpu_custom_call.1
$region0: #{tpu_custom_call.1}
  #allocation0 [shape = 'u32[]', space=smem, size = 0x4, offset = 0x4, fixed_abs, tag = 'smem constant byte address 0x4 - core index']
  #allocation1 [shape = 'u32[144,128]{1,0:T(1,128)}', space=vmem, size = 0x12000, scoped, tag = 'internal scratch']
  %s0 = inlined_call_operand.vmem [shape: f32[64,32], index: 0, kind: input, shape index: {}]
  %s1 = inlined_call_operand.vmem [shape: f32[64,32], index: 1, kind: input, shape index: {}]
  %s2 = inlined_call_operand.vmem [shape: f32[16,32], index: 2, kind: input, shape index: {}]
  %s3 = inlined_call_operand.vmem [shape: bf16[6,32,32], index: 3, kind: input, shape index: {}]
  %s4 = inlined_call_operand.vmem [shape: bf16[32,64], index: 4, kind: input, shape index: {}]
  %s5 = inlined_call_operand.vmem [shape: bf16[64,32], index: 5, kind: input, shape index: {}]
  %s6 = inlined_call_operand.vmem [shape: bf16[32,256], index: 6, kind: input, shape index: {}]
  %s7 = inlined_call_operand.vmem [shape: bf16[256,32], index: 7, kind: input, shape index: {}]
  %s8 = inlined_call_operand.vmem [shape: f32[64,256], index: 8, kind: input, shape index: {}]
  %s9 = inlined_call_operand.vmem [shape: f32[256,64], index: 9, kind: input, shape index: {}]
  %s10 = inlined_call_operand.vmem [shape: f32[32,256], index: 10, kind: input, shape index: {}]
  %s11 = inlined_call_operand.vmem [shape: f32[64,32], index: 11, kind: output, shape index: {}]
  %s12 = sld [smem:[#allocation0]]
  $region77: #{tpu_custom_call.1} parent=0
    _
  %s14 = ssub.s32 1, %s12
  %s15 = scalar_select 0, %s14, %s12
  loop: start=0, step=1, limit=4
  $region2: #{tpu_custom_call.1} parent=0 // loop_pre_header
    _
  $region3: #{tpu_custom_call.1} parent=0 // loop_header
    %s17 = sphi 0, %s21
    %p18 = scmp.ge.s32.totalorder %s17, 4
    %s27 = sphi 0, %s29
    %s30 = sphi 0, %s27
    %s31 = sphi 0, %s30
    %s47 = sphi 0, %s31
    %s53 = sphi 0, %s55
    %s56 = sphi 0, %s53
    %s57 = sphi 0, %s56
    %s73 = sphi 0, %s57
    %s77 = sphi 0, %s77
    %s79 = sphi 0, %s77
    %s80 = sphi 0, %s79
    %s94 = sphi 0, %s80
    %s98 = sphi 0, %s98
    %s100 = sphi 0, %s98
    %s101 = sphi 0, %s100
    %s115 = sphi 0, %s101
    %s119 = sphi 0, %s119
    %s121 = sphi 0, %s119
    %s122 = sphi 0, %s121
    %s136 = sphi 0, %s122
    %s140 = sphi 0, %s140
    %s142 = sphi 0, %s140
    %s143 = sphi 0, %s142
    %s157 = sphi 0, %s143
    %s161 = sphi 0, %s161
    %s163 = sphi 0, %s161
    %s164 = sphi 0, %s163
    %s178 = sphi 0, %s164
    %s182 = sphi 0, %s182
    %s184 = sphi 0, %s182
    %s185 = sphi 0, %s184
    %s199 = sphi 0, %s185
    %s203 = sphi 0, %s203
    %s205 = sphi 0, %s203
    %s206 = sphi 0, %s205
    %s220 = sphi 0, %s206
    %s224 = sphi 0, %s224
    %s226 = sphi 0, %s224
    %s227 = sphi 0, %s226
    %s241 = sphi 0, %s227
    %s245 = sphi 0, %s245
    %s247 = sphi 0, %s245
    %s248 = sphi 0, %s247
    %s262 = sphi 0, %s248
    %s268 = sphi 0, %s270
    %s271 = sphi 0, %s268
    %s272 = sphi 0, %s271
    %s288 = sphi 0, %s272
  $region4: #{tpu_custom_call.1} parent=0 // loop_header_branch
    %20 = sbr.rel (%p18) target = $region8
  $region5: #{tpu_custom_call.1} parent=0 // loop_body
    %s22 = ssub.s32 %s17, 1
    %s23 = ssub.s32 %s17, 2
    %s24 = sadd.s32 %s17, 1
    %s25 = ssub.s32 %s17, %s24
    %p26 = scmp.eq.s32.totalorder %s25, 0
    %s28 = sadd.s32 %s27, 1
    %s29 = scalar_select %p26, %s27, %s28
    %p32 = pneg %p26
    %p33 = scmp.eq.s32.totalorder %s17, 1
    %p34 = por %p32, %p33
    %p35 = scmp.ne.s32.totalorder %s27, %s30
    %p36 = scmp.eq.s32.totalorder %s17, 0
    %p37 = por %p35, %p36
    %p38 = scmp.ne.s32.totalorder %s27, %s30
    %p39 = scmp.eq.s32.totalorder %s22, 1
    %p40 = por %p38, %p39
    %p41 = scmp.ne.s32.totalorder %s30, %s31
    %p42 = scmp.eq.s32.totalorder %s22, 0
    %p43 = por %p41, %p42
    %p44 = scmp.ne.s32.totalorder %s30, %s31
    %p45 = scmp.eq.s32.totalorder %s23, 1
    %p46 = por %p44, %p45
    %p48 = scmp.ne.s32.totalorder %s31, %s47
    %p49 = scmp.eq.s32.totalorder %s23, 0
    %p50 = por %p48, %p49
    %s51 = ssub.s32 %s17, %s24
    %p52 = scmp.eq.s32.totalorder %s51, 0
    %s54 = sadd.s32 %s53, 1
    %s55 = scalar_select %p52, %s53, %s54
    %p58 = pneg %p52
    %p59 = scmp.eq.s32.totalorder %s17, 1
    %p60 = por %p58, %p59
    %p61 = scmp.ne.s32.totalorder %s53, %s56
    %p62 = scmp.eq.s32.totalorder %s17, 0
    %p63 = por %p61, %p62
    %p64 = scmp.ne.s32.totalorder %s53, %s56
    %p65 = scmp.eq.s32.totalorder %s22, 1
    %p66 = por %p64, %p65
    %p67 = scmp.ne.s32.totalorder %s56, %s57
    %p68 = scmp.eq.s32.totalorder %s22, 0
    %p69 = por %p67, %p68
    %p70 = scmp.ne.s32.totalorder %s56, %s57
    %p71 = scmp.eq.s32.totalorder %s23, 1
    %p72 = por %p70, %p71
    %p74 = scmp.ne.s32.totalorder %s57, %s73
    %p75 = scmp.eq.s32.totalorder %s23, 0
    %p76 = por %p74, %p75
    %s78 = sadd.s32 %s77, 1
    %p81 = scmp.eq.s32.totalorder %s17, 1
    %p82 = scmp.ne.s32.totalorder %s77, %s79
    %p83 = scmp.eq.s32.totalorder %s17, 0
    %p84 = por %p82, %p83
    %p85 = scmp.ne.s32.totalorder %s77, %s79
    %p86 = scmp.eq.s32.totalorder %s22, 1
    %p87 = por %p85, %p86
    %p88 = scmp.ne.s32.totalorder %s79, %s80
    %p89 = scmp.eq.s32.totalorder %s22, 0
    %p90 = por %p88, %p89
    %p91 = scmp.ne.s32.totalorder %s79, %s80
    %p92 = scmp.eq.s32.totalorder %s23, 1
    %p93 = por %p91, %p92
    %p95 = scmp.ne.s32.totalorder %s80, %s94
    %p96 = scmp.eq.s32.totalorder %s23, 0
    %p97 = por %p95, %p96
    %s99 = sadd.s32 %s98, 1
    %p102 = scmp.eq.s32.totalorder %s17, 1
    %p103 = scmp.ne.s32.totalorder %s98, %s100
    %p104 = scmp.eq.s32.totalorder %s17, 0
    %p105 = por %p103, %p104
    %p106 = scmp.ne.s32.totalorder %s98, %s100
    %p107 = scmp.eq.s32.totalorder %s22, 1
    %p108 = por %p106, %p107
    %p109 = scmp.ne.s32.totalorder %s100, %s101
    %p110 = scmp.eq.s32.totalorder %s22, 0
    %p111 = por %p109, %p110
    %p112 = scmp.ne.s32.totalorder %s100, %s101
    %p113 = scmp.eq.s32.totalorder %s23, 1
    %p114 = por %p112, %p113
    %p116 = scmp.ne.s32.totalorder %s101, %s115
    %p117 = scmp.eq.s32.totalorder %s23, 0
    %p118 = por %p116, %p117
    %s120 = sadd.s32 %s119, 1
    %p123 = scmp.eq.s32.totalorder %s17, 1
    %p124 = scmp.ne.s32.totalorder %s119, %s121
    %p125 = scmp.eq.s32.totalorder %s17, 0
    %p126 = por %p124, %p125
    %p127 = scmp.ne.s32.totalorder %s119, %s121
    %p128 = scmp.eq.s32.totalorder %s22, 1
    %p129 = por %p127, %p128
    %p130 = scmp.ne.s32.totalorder %s121, %s122
    %p131 = scmp.eq.s32.totalorder %s22, 0
    %p132 = por %p130, %p131
    %p133 = scmp.ne.s32.totalorder %s121, %s122
    %p134 = scmp.eq.s32.totalorder %s23, 1
    %p135 = por %p133, %p134
    %p137 = scmp.ne.s32.totalorder %s122, %s136
    %p138 = scmp.eq.s32.totalorder %s23, 0
    %p139 = por %p137, %p138
    %s141 = sadd.s32 %s140, 1
    %p144 = scmp.eq.s32.totalorder %s17, 1
    %p145 = scmp.ne.s32.totalorder %s140, %s142
    %p146 = scmp.eq.s32.totalorder %s17, 0
    %p147 = por %p145, %p146
    %p148 = scmp.ne.s32.totalorder %s140, %s142
    %p149 = scmp.eq.s32.totalorder %s22, 1
    %p150 = por %p148, %p149
    %p151 = scmp.ne.s32.totalorder %s142, %s143
    %p152 = scmp.eq.s32.totalorder %s22, 0
    %p153 = por %p151, %p152
    %p154 = scmp.ne.s32.totalorder %s142, %s143
    %p155 = scmp.eq.s32.totalorder %s23, 1
    %p156 = por %p154, %p155
    %p158 = scmp.ne.s32.totalorder %s143, %s157
    %p159 = scmp.eq.s32.totalorder %s23, 0
    %p160 = por %p158, %p159
    %s162 = sadd.s32 %s161, 1
    %p165 = scmp.eq.s32.totalorder %s17, 1
    %p166 = scmp.ne.s32.totalorder %s161, %s163
    %p167 = scmp.eq.s32.totalorder %s17, 0
    %p168 = por %p166, %p167
    %p169 = scmp.ne.s32.totalorder %s161, %s163
    %p170 = scmp.eq.s32.totalorder %s22, 1
    %p171 = por %p169, %p170
    %p172 = scmp.ne.s32.totalorder %s163, %s164
    %p173 = scmp.eq.s32.totalorder %s22, 0
    %p174 = por %p172, %p173
    %p175 = scmp.ne.s32.totalorder %s163, %s164
    %p176 = scmp.eq.s32.totalorder %s23, 1
    %p177 = por %p175, %p176
    %p179 = scmp.ne.s32.totalorder %s164, %s178
    %p180 = scmp.eq.s32.totalorder %s23, 0
    %p181 = por %p179, %p180
    %s183 = sadd.s32 %s182, 1
    %p186 = scmp.eq.s32.totalorder %s17, 1
    %p187 = scmp.ne.s32.totalorder %s182, %s184
    %p188 = scmp.eq.s32.totalorder %s17, 0
    %p189 = por %p187, %p188
    %p190 = scmp.ne.s32.totalorder %s182, %s184
    %p191 = scmp.eq.s32.totalorder %s22, 1
    %p192 = por %p190, %p191
    %p193 = scmp.ne.s32.totalorder %s184, %s185
    %p194 = scmp.eq.s32.totalorder %s22, 0
    %p195 = por %p193, %p194
    %p196 = scmp.ne.s32.totalorder %s184, %s185
    %p197 = scmp.eq.s32.totalorder %s23, 1
    %p198 = por %p196, %p197
    %p200 = scmp.ne.s32.totalorder %s185, %s199
    %p201 = scmp.eq.s32.totalorder %s23, 0
    %p202 = por %p200, %p201
    %s204 = sadd.s32 %s203, 1
    %p207 = scmp.eq.s32.totalorder %s17, 1
    %p208 = scmp.ne.s32.totalorder %s203, %s205
    %p209 = scmp.eq.s32.totalorder %s17, 0
    %p210 = por %p208, %p209
    %p211 = scmp.ne.s32.totalorder %s203, %s205
    %p212 = scmp.eq.s32.totalorder %s22, 1
    %p213 = por %p211, %p212
    %p214 = scmp.ne.s32.totalorder %s205, %s206
    %p215 = scmp.eq.s32.totalorder %s22, 0
    %p216 = por %p214, %p215
    %p217 = scmp.ne.s32.totalorder %s205, %s206
    %p218 = scmp.eq.s32.totalorder %s23, 1
    %p219 = por %p217, %p218
    %p221 = scmp.ne.s32.totalorder %s206, %s220
    %p222 = scmp.eq.s32.totalorder %s23, 0
    %p223 = por %p221, %p222
    %s225 = sadd.s32 %s224, 1
    %p228 = scmp.eq.s32.totalorder %s17, 1
    %p229 = scmp.ne.s32.totalorder %s224, %s226
    %p230 = scmp.eq.s32.totalorder %s17, 0
    %p231 = por %p229, %p230
    %p232 = scmp.ne.s32.totalorder %s224, %s226
    %p233 = scmp.eq.s32.totalorder %s22, 1
    %p234 = por %p232, %p233
    %p235 = scmp.ne.s32.totalorder %s226, %s227
    %p236 = scmp.eq.s32.totalorder %s22, 0
    %p237 = por %p235, %p236
    %p238 = scmp.ne.s32.totalorder %s226, %s227
    %p239 = scmp.eq.s32.totalorder %s23, 1
    %p240 = por %p238, %p239
    %p242 = scmp.ne.s32.totalorder %s227, %s241
    %p243 = scmp.eq.s32.totalorder %s23, 0
    %p244 = por %p242, %p243
    %s246 = sadd.s32 %s245, 1
    %p249 = scmp.eq.s32.totalorder %s17, 1
    %p250 = scmp.ne.s32.totalorder %s245, %s247
    %p251 = scmp.eq.s32.totalorder %s17, 0
    %p252 = por %p250, %p251
    %p253 = scmp.ne.s32.totalorder %s245, %s247
    %p254 = scmp.eq.s32.totalorder %s22, 1
    %p255 = por %p253, %p254
    %p256 = scmp.ne.s32.totalorder %s247, %s248
    %p257 = scmp.eq.s32.totalorder %s22, 0
    %p258 = por %p256, %p257
    %p259 = scmp.ne.s32.totalorder %s247, %s248
    %p260 = scmp.eq.s32.totalorder %s23, 1
    %p261 = por %p259, %p260
    %p263 = scmp.ne.s32.totalorder %s248, %s262
    %p264 = scmp.eq.s32.totalorder %s23, 0
    %p265 = por %p263, %p264
    %s266 = ssub.s32 %s17, %s24
    %p267 = scmp.eq.s32.totalorder %s266, 0
    %s269 = sadd.s32 %s268, 1
    %s270 = scalar_select %p267, %s268, %s269
    %p273 = pneg %p267
    %p274 = scmp.eq.s32.totalorder %s17, 1
    %p275 = por %p273, %p274
    %p276 = scmp.ne.s32.totalorder %s268, %s271
    %p277 = scmp.eq.s32.totalorder %s17, 0
    %p278 = por %p276, %p277
    %p279 = scmp.ne.s32.totalorder %s268, %s271
    %p280 = scmp.eq.s32.totalorder %s22, 1
    %p281 = por %p279, %p280
    %p282 = scmp.ne.s32.totalorder %s271, %s272
    %p283 = scmp.eq.s32.totalorder %s22, 0
    %p284 = por %p282, %p283
    %p285 = scmp.ne.s32.totalorder %s271, %s272
    %p286 = scmp.eq.s32.totalorder %s23, 1
    %p287 = por %p285, %p286
    %p289 = scmp.ne.s32.totalorder %s272, %s288
    %p290 = scmp.eq.s32.totalorder %s23, 0
    %p291 = por %p289, %p290
    %p292 = scmp.le.s32.totalorder 1, %s17
    %p293 = scmp.lt.s32.totalorder %s17, 3
    %p294 = pnand %p292, %p293
    %p295 = pneg %p294
    // Predicated region
    $region9: #{tpu_custom_call.1} parent=5 // pred_check
      _
    $region10: #{tpu_custom_call.1} parent=5 // pred_check_branch
      %297 = sbr.rel (%p294) target = $region12
    $region11: #{tpu_custom_call.1} parent=5 // pred_region
      %s298 = ssub.s32 %s17, 1
      // Predicated region
      $region13: #{tpu_custom_call.1} parent=11 // pred_check
        %p299 = pneg %p90
      $region14: #{tpu_custom_call.1} parent=11 // pred_check_branch
        %301 = sbr.rel (%p299) target = $region16
      $region15: #{tpu_custom_call.1} parent=11 // pred_region
        _
      $region16: #{tpu_custom_call.1} parent=11 // pred_fallthru
        _
      // Predicated region
      $region17: #{tpu_custom_call.1} parent=11 // pred_check
        %p302 = pneg %p111
      $region18: #{tpu_custom_call.1} parent=11 // pred_check_branch
        %304 = sbr.rel (%p302) target = $region20
      $region19: #{tpu_custom_call.1} parent=11 // pred_region
        _
      $region20: #{tpu_custom_call.1} parent=11 // pred_fallthru
        _
      // Predicated region
      $region21: #{tpu_custom_call.1} parent=11 // pred_check
        %p305 = pneg %p132
      $region22: #{tpu_custom_call.1} parent=11 // pred_check_branch
        %307 = sbr.rel (%p305) target = $region24
      $region23: #{tpu_custom_call.1} parent=11 // pred_region
        _
      $region24: #{tpu_custom_call.1} parent=11 // pred_fallthru
        _
      // Predicated region
      $region25: #{tpu_custom_call.1} parent=11 // pred_check
        %p308 = pneg %p153
      $region26: #{tpu_custom_call.1} parent=11 // pred_check_branch
        %310 = sbr.rel (%p308) target = $region28
      $region27: #{tpu_custom_call.1} parent=11 // pred_region
        _
      $region28: #{tpu_custom_call.1} parent=11 // pred_fallthru
        _
      // Predicated region
      $region29: #{tpu_custom_call.1} parent=11 // pred_check
        %p311 = pneg %p174
      $region30: #{tpu_custom_call.1} parent=11 // pred_check_branch
        %313 = sbr.rel (%p311) target = $region32
      $region31: #{tpu_custom_call.1} parent=11 // pred_region
        _
      $region32: #{tpu_custom_call.1} parent=11 // pred_fallthru
        _
      // Predicated region
      $region33: #{tpu_custom_call.1} parent=11 // pred_check
        %p314 = pneg %p195
      $region34: #{tpu_custom_call.1} parent=11 // pred_check_branch
        %316 = sbr.rel (%p314) target = $region36
      $region35: #{tpu_custom_call.1} parent=11 // pred_region
        _
      $region36: #{tpu_custom_call.1} parent=11 // pred_fallthru
        _
      // Predicated region
      $region37: #{tpu_custom_call.1} parent=11 // pred_check
        %p317 = pneg %p216
      $region38: #{tpu_custom_call.1} parent=11 // pred_check_branch
        %319 = sbr.rel (%p317) target = $region40
      $region39: #{tpu_custom_call.1} parent=11 // pred_region
        _
      $region40: #{tpu_custom_call.1} parent=11 // pred_fallthru
        _
      // Predicated region
      $region41: #{tpu_custom_call.1} parent=11 // pred_check
        %p320 = pneg %p237
      $region42: #{tpu_custom_call.1} parent=11 // pred_check_branch
        %322 = sbr.rel (%p320) target = $region44
      $region43: #{tpu_custom_call.1} parent=11 // pred_region
        _
      $region44: #{tpu_custom_call.1} parent=11 // pred_fallthru
        _
      // Predicated region
      $region45: #{tpu_custom_call.1} parent=11 // pred_check
        %p323 = pneg %p258
      $region46: #{tpu_custom_call.1} parent=11 // pred_check_branch
        %325 = sbr.rel (%p323) target = $region48
      $region47: #{tpu_custom_call.1} parent=11 // pred_region
        _
      $region48: #{tpu_custom_call.1} parent=11 // pred_fallthru
        _
    $region12: #{tpu_custom_call.1} parent=5 // pred_fallthru
      _
    %p326 = scmp.lt.s32.totalorder %s17, 2
    // Predicated region
    $region49: #{tpu_custom_call.1} parent=5 // pred_check
      %p327 = pneg %p326
    $region50: #{tpu_custom_call.1} parent=5 // pred_check_branch
      %329 = sbr.rel (%p327) target = $region52
    $region51: #{tpu_custom_call.1} parent=5 // pred_region
      // Predicated region
      $region53: #{tpu_custom_call.1} parent=51 // pred_check
        %p330 = pneg %p37
      $region54: #{tpu_custom_call.1} parent=51 // pred_check_branch
        %332 = sbr.rel (%p330) target = $region56
      $region55: #{tpu_custom_call.1} parent=51 // pred_region
        %s333 = smul.u32 4, %s17
        %p334 = scmp.lt.s32.totalorder %s333, 7
        %s335 = scalar_select %p334, %s333, 7
        %s336 = smul.addr %s335, 8
        %s337 = scalar_lea.vmem %s0, %s336
        %s338 = smul.u32 4, %s17
      $region56: #{tpu_custom_call.1} parent=51 // pred_fallthru
        _
      // Predicated region
      $region57: #{tpu_custom_call.1} parent=51 // pred_check
        %p339 = pneg %p63
      $region58: #{tpu_custom_call.1} parent=51 // pred_check_branch
        %341 = sbr.rel (%p339) target = $region60
      $region59: #{tpu_custom_call.1} parent=51 // pred_region
        %s342 = smul.u32 4, %s17
        %p343 = scmp.lt.s32.totalorder %s342, 7
        %s344 = scalar_select %p343, %s342, 7
        %s345 = smul.addr %s344, 8
        %s346 = scalar_lea.vmem %s1, %s345
        %s347 = smul.u32 4, %s17
      $region60: #{tpu_custom_call.1} parent=51 // pred_fallthru
        _
    $region52: #{tpu_custom_call.1} parent=5 // pred_fallthru
      _
    %p348 = scmp.le.s32.totalorder 1, %s17
    %p349 = scmp.lt.s32.totalorder %s17, 3
    %p350 = pnand %p348, %p349
    %p351 = pneg %p350
    // Predicated region
    $region61: #{tpu_custom_call.1} parent=5 // pred_check
      _
    $region62: #{tpu_custom_call.1} parent=5 // pred_check_branch
      %353 = sbr.rel (%p350) target = $region64
    $region63: #{tpu_custom_call.1} parent=5 // pred_region
      %s354 = ssub.s32 %s17, 1
      %s355 = smul.u32 4, %s22
      %p356 = scmp.lt.s32.totalorder %s355, 7
      %s357 = scalar_select %p356, %s355, 7
      %s358 = smul.addr %s357, 8
      %s359 = scalar_lea.vmem %s0, %s358
      %p360 = pneg %p43
      %p361 = pneg %p40
      %s362 = smul.u32 4, %s22
      %p363 = scmp.lt.s32.totalorder %s362, 7
      %s364 = scalar_select %p363, %s362, 7
      %s365 = smul.addr %s364, 8
      %s366 = scalar_lea.vmem %s1, %s365
      %p367 = pneg %p69
      %p368 = pneg %p66
      %p369 = pneg %p90
      %p370 = pneg %p87
      %p371 = pneg %p111
      %p372 = pneg %p108
      %p373 = pneg %p132
      %p374 = pneg %p129
      %p375 = pneg %p153
      %p376 = pneg %p150
      %p377 = pneg %p174
      %p378 = pneg %p171
      %p379 = pneg %p195
      %p380 = pneg %p192
      %p381 = pneg %p216
      %p382 = pneg %p213
      %p383 = pneg %p237
      %p384 = pneg %p234
      %p385 = pneg %p258
      %p386 = pneg %p255
      %p387 = pneg %p284
      %p388 = pneg %p281
      %s389 = smul.u32 4, %s22
      %p390 = scmp.lt.s32.totalorder %s389, 7
      %s391 = scalar_select %p390, %s389, 7
      %s392 = smul.addr %s391, 8
      %s393 = scalar_lea.vmem %s11, %s392
      %s394 = smul.u32 4, %s22
      %p395 = scmp.lt.s32.totalorder %s394, 7
      %s396 = scalar_select %p395, %s394, 7
      %s397 = smul.addr %s396, 8
      %s398 = scalar_lea.vmem %s0, %s397
      %s399 = smul.u32 4, %s22
      %s400 = smul.u32 4, %s22
      %p401 = scmp.lt.s32.totalorder %s400, 7
      %s402 = scalar_select %p401, %s400, 7
      %s403 = smul.addr %s402, 8
      %s404 = scalar_lea.vmem %s1, %s403
      %s405 = smul.u32 4, %s22
      %s406 = smul.u32 4, %s22
      %p407 = scmp.lt.s32.totalorder %s406, 7
      %s408 = scalar_select %p407, %s406, 7
      %s409 = smul.addr %s408, 8
      %s410 = scalar_lea.vmem %s11, %s409
      %s411 = smul.u32 4, %s22
      %v413 = vld [vmem:[%s2] sm:$0xff]
      %v414 = vld [vmem:[%s2 + $0x8] sm:$0xff]
      %v415 = vld [vmem:[%s398] sm:$0xff]
      %v416 = vld [vmem:[%s398 + $0x8] sm:$0xff]
      %v417 = vld [vmem:[%s398 + $0x10] sm:$0xff]
      %v418 = vld [vmem:[%s398 + $0x18] sm:$0xff]
      %v419 = vlaneseq
      %v420 = vshrl.u32 %v419, 7
      %v421 = vsub.s32 0, %v420
      %v422 = vrot.slane %v413, %v421
      %v423 = vadd.f32 %v415, %v422
      %v424 = vadd.f32 %v416, %v422
      %v425 = vadd.f32 %v417, %v422
      %v426 = vadd.f32 %v418, %v422
      %v427 = vld [vmem:[%s3] sm:$0xf]
      %v428 = vld [vmem:[%s3 + $0x4] sm:$0xf]
      %v429 = vld [vmem:[%s3 + $0x8] sm:$0xf]
      %v430 = vld [vmem:[%s3 + $0xc] sm:$0xf]
      %v431 = vpack.c.bf16 %v424, %v423
      %v432 = vpack.c.bf16 %v426, %v425
      %v433 = vlaneseq
      %v434 = vshrl.u32 %v433, 7
      %v435 = vsub.s32 1, %v434
      %v436 = vrot.slane %v413, %v435
      %v441 = vunpack.c.l.b16 %v427
      %v442 = vunpack.c.l.b16 %v428
      %v443 = vunpack.c.l.b16 %v429
      %v444 = vunpack.c.l.b16 %v430
      %v445 = vpack.c.b16 %v442, %v441
      %v446 = vpack.c.b16 %v444, %v443
      %vm449 = vcmask 261120
      %v451 = vsel %vm449, %v431, 0
      %v454 = vsel %vm449, %v432, 0
      %456 = vmatprep.subr.bf16.mxu0 0
      %457 = vmatpush1.bf16.msra.mxu0 %v445
      %458 = vmatprep.subr.bf16.mxu0 0
      %459 = vmatpush1.bf16.msra.mxu0 %v446
      %460 = vmatprep.subr.bf16.mxu0 0
      %461 = vmatpush1.bf16.msra.mxu0 0
      %462 = vmatprep.subr.bf16.mxu0 0
      %463 = vmatpush1.bf16.msra.mxu0 0
      %464 = vmatprep.subr.bf16.mxu0 0
      %465 = vmatpush1.bf16.msra.mxu0 0
      %466 = vmatprep.subr.bf16.mxu0 0
      %467 = vmatpush1.bf16.msra.mxu0 0
      %468 = vmatprep.subr.bf16.mxu0 0
      %469 = vmatpush1.bf16.msra.mxu0 0
      %470 = vmatprep.subr.bf16.mxu0 0
      %471 = vmatpush1.bf16.msra.mxu0 0
      %472 = vmatprep.subr.bf16.mxu0 0
      %473 = vmatpush1.bf16.msra.mxu0 0
      %474 = vmatprep.subr.bf16.mxu0 0
      %475 = vmatpush1.bf16.msra.mxu0 0
      %476 = vmatprep.subr.bf16.mxu0 0
      %477 = vmatpush1.bf16.msra.mxu0 0
      %478 = vmatprep.subr.bf16.mxu0 0
      %479 = vmatpush1.bf16.msra.mxu0 0
      %480 = vmatprep.subr.bf16.mxu0 0
      %481 = vmatpush1.bf16.msra.mxu0 0
      %482 = vmatprep.subr.bf16.mxu0 0
      %483 = vmatpush1.bf16.msra.mxu0 0
      %484 = vmatprep.subr.bf16.mxu0 0
      %485 = vmatpush1.bf16.msra.mxu0 0
      %486 = vmatprep.subr.bf16.mxu0 0
      %487 = vmatpush1.bf16.msra.mxu0 0
      %488 = vmatprep.mubr.bf16.mxu0 0
      %489 = vmatmul.mubr.bf16.gmra.mrb[0].mxu0 %v451
      %v490 = vpop.f32.mrb[0].mxu0
      %v491 = vadd.f32 %v436, %v490
      %v492 = vpop.f32.mrb[0].mxu0
      %v493 = vpop.f32.mrb[0].mxu0
      %v494 = vadd.f32 %v436, %v493
      %v495 = vpop.f32.mrb[0].mxu0
      %496 = vmatprep.mubr.bf16.mxu0 0
      %497 = vmatmul.mubr.bf16.gmra.mrb[0].mxu0 %v454
      %v498 = vpop.f32.mrb[0].mxu0
      %v499 = vadd.f32 %v436, %v498
      %v500 = vpop.f32.mrb[0].mxu0
      %v501 = vpop.f32.mrb[0].mxu0
      %v502 = vadd.f32 %v436, %v501
      %v503 = vpop.f32.mrb[0].mxu0
      %504 = vdwg.mxu0
      %v505 = vmax.f32 %v491, 0.0
      %v506 = vmax.f32 %v494, 0.0
      %v507 = vmax.f32 %v499, 0.0
      %v508 = vmax.f32 %v502, 0.0
      %v509 = vld [vmem:[%s404] sm:$0xff]
      %v510 = vld [vmem:[%s404 + $0x8] sm:$0xff]
      %v511 = vld [vmem:[%s404 + $0x10] sm:$0xff]
      %v512 = vld [vmem:[%s404 + $0x18] sm:$0xff]
      %v513 = vadd.f32 %v509, %v422
      %v514 = vadd.f32 %v510, %v422
      %v515 = vadd.f32 %v511, %v422
      %v516 = vadd.f32 %v512, %v422
      %s517 = scalar_lea.vmem %s3, 16
      %v518 = vld [vmem:[%s517] sm:$0xf]
      %v519 = vld [vmem:[%s517 + $0x4] sm:$0xf]
      %v520 = vld [vmem:[%s517 + $0x8] sm:$0xf]
      %v521 = vld [vmem:[%s517 + $0xc] sm:$0xf]
      %v522 = vpack.c.bf16 %v514, %v513
      %v523 = vpack.c.bf16 %v516, %v515
      %v524 = vlaneseq
      %v525 = vshrl.u32 %v524, 7
      %v526 = vsub.s32 2, %v525
      %v527 = vrot.slane %v413, %v526
      %v532 = vunpack.c.l.b16 %v518
      %v533 = vunpack.c.l.b16 %v519
      %v534 = vunpack.c.l.b16 %v520
      %v535 = vunpack.c.l.b16 %v521
      %v536 = vpack.c.b16 %v533, %v532
      %v537 = vpack.c.b16 %v535, %v534
      %v541 = vsel %vm449, %v522, 0
      %v544 = vsel %vm449, %v523, 0
      %546 = vmatprep.subr.bf16.mxu0 0
      %547 = vmatpush1.bf16.msra.mxu0 %v536
      %548 = vmatprep.subr.bf16.mxu0 0
      %549 = vmatpush1.bf16.msra.mxu0 %v537
      %550 = vmatprep.subr.bf16.mxu0 0
      %551 = vmatpush1.bf16.msra.mxu0 0
      %552 = vmatprep.subr.bf16.mxu0 0
      %553 = vmatpush1.bf16.msra.mxu0 0
      %554 = vmatprep.subr.bf16.mxu0 0
      %555 = vmatpush1.bf16.msra.mxu0 0
      %556 = vmatprep.subr.bf16.mxu0 0
      %557 = vmatpush1.bf16.msra.mxu0 0
      %558 = vmatprep.subr.bf16.mxu0 0
      %559 = vmatpush1.bf16.msra.mxu0 0
      %560 = vmatprep.subr.bf16.mxu0 0
      %561 = vmatpush1.bf16.msra.mxu0 0
      %562 = vmatprep.subr.bf16.mxu0 0
      %563 = vmatpush1.bf16.msra.mxu0 0
      %564 = vmatprep.subr.bf16.mxu0 0
      %565 = vmatpush1.bf16.msra.mxu0 0
      %566 = vmatprep.subr.bf16.mxu0 0
      %567 = vmatpush1.bf16.msra.mxu0 0
      %568 = vmatprep.subr.bf16.mxu0 0
      %569 = vmatpush1.bf16.msra.mxu0 0
      %570 = vmatprep.subr.bf16.mxu0 0
      %571 = vmatpush1.bf16.msra.mxu0 0
      %572 = vmatprep.subr.bf16.mxu0 0
      %573 = vmatpush1.bf16.msra.mxu0 0
      %574 = vmatprep.subr.bf16.mxu0 0
      %575 = vmatpush1.bf16.msra.mxu0 0
      %576 = vmatprep.subr.bf16.mxu0 0
      %577 = vmatpush1.bf16.msra.mxu0 0
      %578 = vmatprep.mubr.bf16.mxu0 0
      %579 = vmatmul.mubr.bf16.gmra.mrb[0].mxu0 %v541
      %v580 = vpop.f32.mrb[0].mxu0
      %v581 = vadd.f32 %v527, %v580
      %v582 = vpop.f32.mrb[0].mxu0
      %v583 = vpop.f32.mrb[0].mxu0
      %v584 = vadd.f32 %v527, %v583
      %v585 = vpop.f32.mrb[0].mxu0
      %586 = vmatprep.mubr.bf16.mxu0 0
      %587 = vmatmul.mubr.bf16.gmra.mrb[0].mxu0 %v544
      %v588 = vpop.f32.mrb[0].mxu0
      %v589 = vadd.f32 %v527, %v588
      %v590 = vpop.f32.mrb[0].mxu0
      %v591 = vpop.f32.mrb[0].mxu0
      %v592 = vadd.f32 %v527, %v591
      %v593 = vpop.f32.mrb[0].mxu0
      %594 = vdwg.mxu0
      %v595 = vmax.f32 %v581, 0.0
      %v596 = vmax.f32 %v584, 0.0
      %v597 = vmax.f32 %v589, 0.0
      %v598 = vmax.f32 %v592, 0.0
      %v599 = vld [vmem:[%s5] sm:$0xf]
      %v600 = vld [vmem:[%s5 + $0x4] sm:$0xf]
      %v601 = vld [vmem:[%s5 + $0x8] sm:$0xf]
      %v602 = vld [vmem:[%s5 + $0xc] sm:$0xf]
      %v603 = vld [vmem:[%s5 + $0x10] sm:$0xf]
      %v604 = vld [vmem:[%s5 + $0x14] sm:$0xf]
      %v605 = vld [vmem:[%s5 + $0x18] sm:$0xf]
      %v606 = vld [vmem:[%s5 + $0x1c] sm:$0xf]
      %607 = vxpose.xlu0.b32.start [1/16] %v595, 128
      %608 = vxpose.xlu0.b32.cont [2/16] %v596, 128
      %609 = vxpose.xlu0.b32.cont [3/16] %v597, 128
      %610 = vxpose.xlu0.b32.cont [4/16] %v598, 128
      %611 = vxpose.xlu0.b32.cont [5/16] 0.0, 128
      %612 = vxpose.xlu0.b32.cont [6/16] 0.0, 128
      %613 = vxpose.xlu0.b32.cont [7/16] 0.0, 128
      %614 = vxpose.xlu0.b32.cont [8/16] 0.0, 128
      %615 = vxpose.xlu0.b32.cont [9/16] 0.0, 128
      %616 = vxpose.xlu0.b32.cont [10/16] 0.0, 128
      %617 = vxpose.xlu0.b32.cont [11/16] 0.0, 128
      %618 = vxpose.xlu0.b32.cont [12/16] 0.0, 128
      %619 = vxpose.xlu0.b32.cont [13/16] 0.0, 128
      %620 = vxpose.xlu0.b32.cont [14/16] 0.0, 128
      %621 = vxpose.xlu0.b32.cont [15/16] 0.0, 128
      %622 = vxpose.xlu0.b32.end [16/16] 0.0, 128
      %v623 = vpop.trf.xlu0
      %v624 = vpop.trf.xlu0
      %v625 = vpop.trf.xlu0
      %v626 = vpop.trf.xlu0
      %v627 = vpop.trf.xlu0
      %v628 = vpop.trf.xlu0
      %v629 = vpop.trf.xlu0
      %v630 = vpop.trf.xlu0
      %v631 = vpop.trf.xlu0
      %v632 = vpop.trf.xlu0
      %v633 = vpop.trf.xlu0
      %v634 = vpop.trf.xlu0
      %v635 = vpop.trf.xlu0
      %v636 = vpop.trf.xlu0
      %v637 = vpop.trf.xlu0
      %v638 = vpop.trf.xlu0
      %v639 = vpack.c.bf16 %v624, %v623
      %v640 = vpack.c.bf16 %v626, %v625
      %v649 = vunpack.c.l.b16 %v599
      %v650 = vunpack.c.l.b16 %v600
      %v651 = vunpack.c.l.b16 %v601
      %v652 = vunpack.c.l.b16 %v602
      %v653 = vunpack.c.l.b16 %v603
      %v654 = vunpack.c.l.b16 %v604
      %v655 = vunpack.c.l.b16 %v605
      %v656 = vunpack.c.l.b16 %v606
      %v657 = vpack.c.b16 %v650, %v649
      %v658 = vpack.c.b16 %v652, %v651
      %v659 = vpack.c.b16 %v654, %v653
      %v660 = vpack.c.b16 %v656, %v655
      %v662 = vsel %vm449, %v657, 0
      %v665 = vsel %vm449, %v658, 0
      %v668 = vsel %vm449, %v659, 0
      %v671 = vsel %vm449, %v660, 0
      %673 = vmatprep.subr.bf16.mxu0 0
      %674 = vmatpush1.bf16.msra.mxu0 %v639
      %675 = vmatprep.subr.bf16.mxu0 0
      %676 = vmatpush1.bf16.msra.mxu0 %v640
      %677 = vmatprep.subr.bf16.mxu0 0
      %678 = vmatpush1.bf16.msra.mxu0 0
      %679 = vmatprep.subr.bf16.mxu0 0
      %680 = vmatpush1.bf16.msra.mxu0 0
      %681 = vmatprep.subr.bf16.mxu0 0
      %682 = vmatpush1.bf16.msra.mxu0 0
      %683 = vmatprep.subr.bf16.mxu0 0
      %684 = vmatpush1.bf16.msra.mxu0 0
      %685 = vmatprep.subr.bf16.mxu0 0
      %686 = vmatpush1.bf16.msra.mxu0 0
      %687 = vmatprep.subr.bf16.mxu0 0
      %688 = vmatpush1.bf16.msra.mxu0 0
      %689 = vmatprep.subr.bf16.mxu0 0
      %690 = vmatpush1.bf16.msra.mxu0 0
      %691 = vmatprep.subr.bf16.mxu0 0
      %692 = vmatpush1.bf16.msra.mxu0 0
      %693 = vmatprep.subr.bf16.mxu0 0
      %694 = vmatpush1.bf16.msra.mxu0 0
      %695 = vmatprep.subr.bf16.mxu0 0
      %696 = vmatpush1.bf16.msra.mxu0 0
      %697 = vmatprep.subr.bf16.mxu0 0
      %698 = vmatpush1.bf16.msra.mxu0 0
      %699 = vmatprep.subr.bf16.mxu0 0
      %700 = vmatpush1.bf16.msra.mxu0 0
      %701 = vmatprep.subr.bf16.mxu0 0
      %702 = vmatpush1.bf16.msra.mxu0 0
      %703 = vmatprep.subr.bf16.mxu0 0
      %704 = vmatpush1.bf16.msra.mxu0 0
      %705 = vmatprep.mubr.bf16.mxu0 0
      %706 = vmatmul.mubr.bf16.gmra.mrb[0].mxu0 %v662
      %v707 = vpop.f32.mrb[0].mxu0
      %v708 = vadd.f32 0.0, %v707
      %v709 = vpop.f32.mrb[0].mxu0
      %v710 = vpop.f32.mrb[0].mxu0
      %v711 = vadd.f32 0.0, %v710
      %v712 = vpop.f32.mrb[0].mxu0
      %713 = vmatprep.mubr.bf16.mxu0 0
      %714 = vmatmul.mubr.bf16.gmra.mrb[0].mxu0 %v665
      %v715 = vpop.f32.mrb[0].mxu0
      %v716 = vadd.f32 0.0, %v715
      %v717 = vpop.f32.mrb[0].mxu0
      %v718 = vpop.f32.mrb[0].mxu0
      %v719 = vadd.f32 0.0, %v718
      %v720 = vpop.f32.mrb[0].mxu0
      %721 = vmatprep.mubr.bf16.mxu0 0
      %722 = vmatmul.mubr.bf16.gmra.mrb[0].mxu0 %v668
      %v723 = vpop.f32.mrb[0].mxu0
      %v724 = vadd.f32 0.0, %v723
      %v725 = vpop.f32.mrb[0].mxu0
      %v726 = vpop.f32.mrb[0].mxu0
      %v727 = vadd.f32 0.0, %v726
      %v728 = vpop.f32.mrb[0].mxu0
      %729 = vmatprep.mubr.bf16.mxu0 0
      %730 = vmatmul.mubr.bf16.gmra.mrb[0].mxu0 %v671
      %v731 = vpop.f32.mrb[0].mxu0
      %v732 = vadd.f32 0.0, %v731
      %v733 = vpop.f32.mrb[0].mxu0
      %v734 = vpop.f32.mrb[0].mxu0
      %v735 = vadd.f32 0.0, %v734
      %v736 = vpop.f32.mrb[0].mxu0
      %737 = vdwg.mxu0
      %v738 = vld [vmem:[%s6] sm:$0xff]
      %v739 = vld [vmem:[%s6 + $0x8] sm:$0xff]
      %v740 = vld [vmem:[%s6 + $0x10] sm:$0xff]
      %v741 = vld [vmem:[%s6 + $0x18] sm:$0xff]
      %v742 = vpack.c.bf16 %v711, %v708
      %v743 = vpack.c.bf16 %v719, %v716
      %v744 = vpack.c.bf16 %v727, %v724
      %v745 = vpack.c.bf16 %v735, %v732
      %v750 = vunpack.c.l.b16 %v738
      %v751 = vunpack.c.h.b16 %v738
      %v752 = vunpack.c.l.b16 %v739
      %v753 = vunpack.c.h.b16 %v739
      %v754 = vunpack.c.l.b16 %v740
      %v755 = vunpack.c.h.b16 %v740
      %v756 = vunpack.c.l.b16 %v741
      %v757 = vunpack.c.h.b16 %v741
      %v758 = vpack.c.b16 %v752, %v750
      %v759 = vpack.c.b16 %v753, %v751
      %v760 = vpack.c.b16 %v756, %v754
      %v761 = vpack.c.b16 %v757, %v755
      %v767 = vsel %vm449, %v742, 0
      %v770 = vsel %vm449, %v743, 0
      %v773 = vsel %vm449, %v744, 0
      %v776 = vsel %vm449, %v745, 0
      %778 = vmatprep.subr.bf16.mxu0 %v759
      %779 = vmatpush1.bf16.msra.mxu0 %v758
      %780 = vmatprep.subr.bf16.mxu0 %v761
      %781 = vmatpush1.bf16.msra.mxu0 %v760
      %782 = vmatprep.subr.bf16.mxu0 0
      %783 = vmatpush1.bf16.msra.mxu0 0
      %784 = vmatprep.subr.bf16.mxu0 0
      %785 = vmatpush1.bf16.msra.mxu0 0
      %786 = vmatprep.subr.bf16.mxu0 0
      %787 = vmatpush1.bf16.msra.mxu0 0
      %788 = vmatprep.subr.bf16.mxu0 0
      %789 = vmatpush1.bf16.msra.mxu0 0
      %790 = vmatprep.subr.bf16.mxu0 0
      %791 = vmatpush1.bf16.msra.mxu0 0
      %792 = vmatprep.subr.bf16.mxu0 0
      %793 = vmatpush1.bf16.msra.mxu0 0
      %794 = vmatprep.subr.bf16.mxu0 0
      %795 = vmatpush1.bf16.msra.mxu0 0
      %796 = vmatprep.subr.bf16.mxu0 0
      %797 = vmatpush1.bf16.msra.mxu0 0
      %798 = vmatprep.subr.bf16.mxu0 0
      %799 = vmatpush1.bf16.msra.mxu0 0
      %800 = vmatprep.subr.bf16.mxu0 0
      %801 = vmatpush1.bf16.msra.mxu0 0
      %802 = vmatprep.subr.bf16.mxu0 0
      %803 = vmatpush1.bf16.msra.mxu0 0
      %804 = vmatprep.subr.bf16.mxu0 0
      %805 = vmatpush1.bf16.msra.mxu0 0
      %806 = vmatprep.subr.bf16.mxu0 0
      %807 = vmatpush1.bf16.msra.mxu0 0
      %808 = vmatprep.subr.bf16.mxu0 0
      %809 = vmatpush1.bf16.msra.mxu0 0
      %810 = vmatprep.mubr.bf16.mxu0 0
      %811 = vmatmul.mubr.bf16.gmra.mrb[0].mxu0 %v767
      %v812 = vpop.f32.mrb[0].mxu0
      %v813 = vadd.f32 0.0, %v812
      %v814 = vpop.f32.mrb[0].mxu0
      %v815 = vadd.f32 0.0, %v814
      %v816 = vpop.f32.mrb[0].mxu0
      %v817 = vadd.f32 0.0, %v816
      %v818 = vpop.f32.mrb[0].mxu0
      %v819 = vadd.f32 0.0, %v818
      %820 = vmatprep.mubr.bf16.mxu0 0
      %821 = vmatmul.mubr.bf16.gmra.mrb[0].mxu0 %v770
      %v822 = vpop.f32.mrb[0].mxu0
      %v823 = vadd.f32 0.0, %v822
      %v824 = vpop.f32.mrb[0].mxu0
      %v825 = vadd.f32 0.0, %v824
      %v826 = vpop.f32.mrb[0].mxu0
      %v827 = vadd.f32 0.0, %v826
      %v828 = vpop.f32.mrb[0].mxu0
      %v829 = vadd.f32 0.0, %v828
      %830 = vmatprep.mubr.bf16.mxu0 0
      %831 = vmatmul.mubr.bf16.gmra.mrb[0].mxu0 %v773
      %v832 = vpop.f32.mrb[0].mxu0
      %v833 = vadd.f32 0.0, %v832
      %v834 = vpop.f32.mrb[0].mxu0
      %v835 = vadd.f32 0.0, %v834
      %v836 = vpop.f32.mrb[0].mxu0
      %v837 = vadd.f32 0.0, %v836
      %v838 = vpop.f32.mrb[0].mxu0
      %v839 = vadd.f32 0.0, %v838
      %840 = vmatprep.mubr.bf16.mxu0 0
      %841 = vmatmul.mubr.bf16.gmra.mrb[0].mxu0 %v776
      %v842 = vpop.f32.mrb[0].mxu0
      %v843 = vadd.f32 0.0, %v842
      %v844 = vpop.f32.mrb[0].mxu0
      %v845 = vadd.f32 0.0, %v844
      %v846 = vpop.f32.mrb[0].mxu0
      %v847 = vadd.f32 0.0, %v846
      %v848 = vpop.f32.mrb[0].mxu0
      %v849 = vadd.f32 0.0, %v848
      %850 = vdwg.mxu0
      %v851 = vld [vmem:[%s8] sm:$0xff]
      %v852 = vld [vmem:[%s8 + $0x8] sm:$0xff]
      %v853 = vld [vmem:[%s8 + $0x10] sm:$0xff]
      %v854 = vld [vmem:[%s8 + $0x18] sm:$0xff]
      %v855 = vld [vmem:[%s8 + $0x20] sm:$0xff]
      %v856 = vld [vmem:[%s8 + $0x28] sm:$0xff]
      %v857 = vld [vmem:[%s8 + $0x30] sm:$0xff]
      %v858 = vld [vmem:[%s8 + $0x38] sm:$0xff]
      %v859 = vld [vmem:[%s8 + $0x40] sm:$0xff]
      %v860 = vld [vmem:[%s8 + $0x48] sm:$0xff]
      %v861 = vld [vmem:[%s8 + $0x50] sm:$0xff]
      %v862 = vld [vmem:[%s8 + $0x58] sm:$0xff]
      %v863 = vld [vmem:[%s8 + $0x60] sm:$0xff]
      %v864 = vld [vmem:[%s8 + $0x68] sm:$0xff]
      %v865 = vld [vmem:[%s8 + $0x70] sm:$0xff]
      %v866 = vld [vmem:[%s8 + $0x78] sm:$0xff]
      %v867 = vmul.f32 %v813, %v851
      %v868 = vmul.f32 %v815, %v852
      %v869 = vmul.f32 %v817, %v853
      %v870 = vmul.f32 %v819, %v854
      %v871 = vmul.f32 %v823, %v855
      %v872 = vmul.f32 %v825, %v856
      %v873 = vmul.f32 %v827, %v857
      %v874 = vmul.f32 %v829, %v858
      %v875 = vmul.f32 %v833, %v859
      %v876 = vmul.f32 %v835, %v860
      %v877 = vmul.f32 %v837, %v861
      %v878 = vmul.f32 %v839, %v862
      %v879 = vmul.f32 %v843, %v863
      %v880 = vmul.f32 %v845, %v864
      %v881 = vmul.f32 %v847, %v865
      %v882 = vmul.f32 %v849, %v866
      %v883 = vpack.c.bf16 %v869, %v867
      %v884 = vpack.c.bf16 %v870, %v868
      %v885 = vpack.c.bf16 %v873, %v871
      %v886 = vpack.c.bf16 %v874, %v872
      %v887 = vpack.c.bf16 %v877, %v875
      %v888 = vpack.c.bf16 %v878, %v876
      %v889 = vpack.c.bf16 %v881, %v879
      %v890 = vpack.c.bf16 %v882, %v880
      %v891 = vld [vmem:[%s7] sm:$0xf]
      %v892 = vld [vmem:[%s7 + $0x4] sm:$0xf]
      %v893 = vld [vmem:[%s7 + $0x8] sm:$0xf]
      %v894 = vld [vmem:[%s7 + $0xc] sm:$0xf]
      %v895 = vld [vmem:[%s7 + $0x10] sm:$0xf]
      %v896 = vld [vmem:[%s7 + $0x14] sm:$0xf]
      %v897 = vld [vmem:[%s7 + $0x18] sm:$0xf]
      %v898 = vld [vmem:[%s7 + $0x1c] sm:$0xf]
      %v899 = vld [vmem:[%s7 + $0x20] sm:$0xf]
      %v900 = vld [vmem:[%s7 + $0x24] sm:$0xf]
      %v901 = vld [vmem:[%s7 + $0x28] sm:$0xf]
      %v902 = vld [vmem:[%s7 + $0x2c] sm:$0xf]
      %v903 = vld [vmem:[%s7 + $0x30] sm:$0xf]
      %v904 = vld [vmem:[%s7 + $0x34] sm:$0xf]
      %v905 = vld [vmem:[%s7 + $0x38] sm:$0xf]
      %v906 = vld [vmem:[%s7 + $0x3c] sm:$0xf]
      %v907 = vld [vmem:[%s7 + $0x40] sm:$0xf]
      %v908 = vld [vmem:[%s7 + $0x44] sm:$0xf]
      %v909 = vld [vmem:[%s7 + $0x48] sm:$0xf]
      %v910 = vld [vmem:[%s7 + $0x4c] sm:$0xf]
      %v911 = vld [vmem:[%s7 + $0x50] sm:$0xf]
      %v912 = vld [vmem:[%s7 + $0x54] sm:$0xf]
      %v913 = vld [vmem:[%s7 + $0x58] sm:$0xf]
      %v914 = vld [vmem:[%s7 + $0x5c] sm:$0xf]
      %v915 = vld [vmem:[%s7 + $0x60] sm:$0xf]
      %v916 = vld [vmem:[%s7 + $0x64] sm:$0xf]
      %v917 = vld [vmem:[%s7 + $0x68] sm:$0xf]
      %v918 = vld [vmem:[%s7 + $0x6c] sm:$0xf]
      %v919 = vld [vmem:[%s7 + $0x70] sm:$0xf]
      %v920 = vld [vmem:[%s7 + $0x74] sm:$0xf]
      %v921 = vld [vmem:[%s7 + $0x78] sm:$0xf]
      %v922 = vld [vmem:[%s7 + $0x7c] sm:$0xf]
      %v923 = vpack.c.bf16 %v596, %v595
      %v924 = vpack.c.bf16 %v598, %v597
      %v957 = vunpack.c.l.b16 %v891
      %v958 = vunpack.c.l.b16 %v892
      %v959 = vunpack.c.l.b16 %v893
      %v960 = vunpack.c.l.b16 %v894
      %v961 = vunpack.c.l.b16 %v895
      %v962 = vunpack.c.l.b16 %v896
      %v963 = vunpack.c.l.b16 %v897
      %v964 = vunpack.c.l.b16 %v898
      %v965 = vunpack.c.l.b16 %v899
      %v966 = vunpack.c.l.b16 %v900
      %v967 = vunpack.c.l.b16 %v901
      %v968 = vunpack.c.l.b16 %v902
      %v969 = vunpack.c.l.b16 %v903
      %v970 = vunpack.c.l.b16 %v904
      %v971 = vunpack.c.l.b16 %v905
      %v972 = vunpack.c.l.b16 %v906
      %v973 = vunpack.c.l.b16 %v907
      %v974 = vunpack.c.l.b16 %v908
      %v975 = vunpack.c.l.b16 %v909
      %v976 = vunpack.c.l.b16 %v910
      %v977 = vunpack.c.l.b16 %v911
      %v978 = vunpack.c.l.b16 %v912
      %v979 = vunpack.c.l.b16 %v913
      %v980 = vunpack.c.l.b16 %v914
      %v981 = vunpack.c.l.b16 %v915
      %v982 = vunpack.c.l.b16 %v916
      %v983 = vunpack.c.l.b16 %v917
      %v984 = vunpack.c.l.b16 %v918
      %v985 = vunpack.c.l.b16 %v919
      %v986 = vunpack.c.l.b16 %v920
      %v987 = vunpack.c.l.b16 %v921
      %v988 = vunpack.c.l.b16 %v922
      %v989 = vpack.c.b16 %v958, %v957
      %v990 = vpack.c.b16 %v960, %v959
      %v991 = vpack.c.b16 %v962, %v961
      %v992 = vpack.c.b16 %v964, %v963
      %v993 = vpack.c.b16 %v966, %v965
      %v994 = vpack.c.b16 %v968, %v967
      %v995 = vpack.c.b16 %v970, %v969
      %v996 = vpack.c.b16 %v972, %v971
      %v997 = vpack.c.b16 %v974, %v973
      %v998 = vpack.c.b16 %v976, %v975
      %v999 = vpack.c.b16 %v978, %v977
      %v1000 = vpack.c.b16 %v980, %v979
      %v1001 = vpack.c.b16 %v982, %v981
      %v1002 = vpack.c.b16 %v984, %v983
      %v1003 = vpack.c.b16 %v986, %v985
      %v1004 = vpack.c.b16 %v988, %v987
      %v1006 = vsel %vm449, %v989, 0
      %v1009 = vsel %vm449, %v990, 0
      %v1012 = vsel %vm449, %v991, 0
      %v1015 = vsel %vm449, %v992, 0
      %v1018 = vsel %vm449, %v993, 0
      %v1021 = vsel %vm449, %v994, 0
      %v1024 = vsel %vm449, %v995, 0
      %v1027 = vsel %vm449, %v996, 0
      %v1030 = vsel %vm449, %v997, 0
      %v1033 = vsel %vm449, %v998, 0
      %v1036 = vsel %vm449, %v999, 0
      %v1039 = vsel %vm449, %v1000, 0
      %v1042 = vsel %vm449, %v1001, 0
      %v1045 = vsel %vm449, %v1002, 0
      %v1048 = vsel %vm449, %v1003, 0
      %v1051 = vsel %vm449, %v1004, 0
      %1053 = vmatprep.subr.bf16.mxu0 0
      %1054 = vmatpush1.bf16.msra.mxu0 %v923
      %1055 = vmatprep.subr.bf16.mxu0 0
      %1056 = vmatpush1.bf16.msra.mxu0 %v924
      %1057 = vmatprep.subr.bf16.mxu0 0
      %1058 = vmatpush1.bf16.msra.mxu0 0
      %1059 = vmatprep.subr.bf16.mxu0 0
      %1060 = vmatpush1.bf16.msra.mxu0 0
      %1061 = vmatprep.subr.bf16.mxu0 0
      %1062 = vmatpush1.bf16.msra.mxu0 0
      %1063 = vmatprep.subr.bf16.mxu0 0
      %1064 = vmatpush1.bf16.msra.mxu0 0
      %1065 = vmatprep.subr.bf16.mxu0 0
      %1066 = vmatpush1.bf16.msra.mxu0 0
      %1067 = vmatprep.subr.bf16.mxu0 0
      %1068 = vmatpush1.bf16.msra.mxu0 0
      %1069 = vmatprep.subr.bf16.mxu0 0
      %1070 = vmatpush1.bf16.msra.mxu0 0
      %1071 = vmatprep.subr.bf16.mxu0 0
      %1072 = vmatpush1.bf16.msra.mxu0 0
      %1073 = vmatprep.subr.bf16.mxu0 0
      %1074 = vmatpush1.bf16.msra.mxu0 0
      %1075 = vmatprep.subr.bf16.mxu0 0
      %1076 = vmatpush1.bf16.msra.mxu0 0
      %1077 = vmatprep.subr.bf16.mxu0 0
      %1078 = vmatpush1.bf16.msra.mxu0 0
      %1079 = vmatprep.subr.bf16.mxu0 0
      %1080 = vmatpush1.bf16.msra.mxu0 0
      %1081 = vmatprep.subr.bf16.mxu0 0
      %1082 = vmatpush1.bf16.msra.mxu0 0
      %1083 = vmatprep.subr.bf16.mxu0 0
      %1084 = vmatpush1.bf16.msra.mxu0 0
      %1085 = vmatprep.mubr.bf16.mxu0 0
      %1086 = vmatmul.mubr.bf16.gmra.mrb[0].mxu0 %v1006
      %v1087 = vpop.f32.mrb[0].mxu0
      %v1088 = vadd.f32 0.0, %v1087
      %v1089 = vpop.f32.mrb[0].mxu0
      %v1090 = vpop.f32.mrb[0].mxu0
      %v1091 = vadd.f32 0.0, %v1090
      %v1092 = vpop.f32.mrb[0].mxu0
      %1093 = vmatprep.mubr.bf16.mxu0 0
      %1094 = vmatmul.mubr.bf16.gmra.mrb[0].mxu0 %v1009
      %v1095 = vpop.f32.mrb[0].mxu0
      %v1096 = vadd.f32 0.0, %v1095
      %v1097 = vpop.f32.mrb[0].mxu0
      %v1098 = vpop.f32.mrb[0].mxu0
      %v1099 = vadd.f32 0.0, %v1098
      %v1100 = vpop.f32.mrb[0].mxu0
      %1101 = vmatprep.mubr.bf16.mxu0 0
      %1102 = vmatmul.mubr.bf16.gmra.mrb[0].mxu0 %v1012
      %v1103 = vpop.f32.mrb[0].mxu0
      %v1104 = vadd.f32 0.0, %v1103
      %v1105 = vpop.f32.mrb[0].mxu0
      %v1106 = vpop.f32.mrb[0].mxu0
      %v1107 = vadd.f32 0.0, %v1106
      %v1108 = vpop.f32.mrb[0].mxu0
      %1109 = vmatprep.mubr.bf16.mxu0 0
      %1110 = vmatmul.mubr.bf16.gmra.mrb[0].mxu0 %v1015
      %v1111 = vpop.f32.mrb[0].mxu0
      %v1112 = vadd.f32 0.0, %v1111
      %v1113 = vpop.f32.mrb[0].mxu0
      %v1114 = vpop.f32.mrb[0].mxu0
      %v1115 = vadd.f32 0.0, %v1114
      %v1116 = vpop.f32.mrb[0].mxu0
      %1117 = vmatprep.mubr.bf16.mxu0 0
      %1118 = vmatmul.mubr.bf16.gmra.mrb[0].mxu0 %v1018
      %v1119 = vpop.f32.mrb[0].mxu0
      %v1120 = vadd.f32 0.0, %v1119
      %v1121 = vpop.f32.mrb[0].mxu0
      %v1122 = vpop.f32.mrb[0].mxu0
      %v1123 = vadd.f32 0.0, %v1122
      %v1124 = vpop.f32.mrb[0].mxu0
      %1125 = vmatprep.mubr.bf16.mxu0 0
      %1126 = vmatmul.mubr.bf16.gmra.mrb[0].mxu0 %v1021
      %v1127 = vpop.f32.mrb[0].mxu0
      %v1128 = vadd.f32 0.0, %v1127
      %v1129 = vpop.f32.mrb[0].mxu0
      %v1130 = vpop.f32.mrb[0].mxu0
      %v1131 = vadd.f32 0.0, %v1130
      %v1132 = vpop.f32.mrb[0].mxu0
      %1133 = vmatprep.mubr.bf16.mxu0 0
      %1134 = vmatmul.mubr.bf16.gmra.mrb[0].mxu0 %v1024
      %v1135 = vpop.f32.mrb[0].mxu0
      %v1136 = vadd.f32 0.0, %v1135
      %v1137 = vpop.f32.mrb[0].mxu0
      %v1138 = vpop.f32.mrb[0].mxu0
      %v1139 = vadd.f32 0.0, %v1138
      %v1140 = vpop.f32.mrb[0].mxu0
      %1141 = vmatprep.mubr.bf16.mxu0 0
      %1142 = vmatmul.mubr.bf16.gmra.mrb[0].mxu0 %v1027
      %v1143 = vpop.f32.mrb[0].mxu0
      %v1144 = vadd.f32 0.0, %v1143
      %v1145 = vpop.f32.mrb[0].mxu0
      %v1146 = vpop.f32.mrb[0].mxu0
      %v1147 = vadd.f32 0.0, %v1146
      %v1148 = vpop.f32.mrb[0].mxu0
      %1149 = vmatprep.mubr.bf16.mxu0 0
      %1150 = vmatmul.mubr.bf16.gmra.mrb[0].mxu0 %v1030
      %v1151 = vpop.f32.mrb[0].mxu0
      %v1152 = vadd.f32 0.0, %v1151
      %v1153 = vpop.f32.mrb[0].mxu0
      %v1154 = vpop.f32.mrb[0].mxu0
      %v1155 = vadd.f32 0.0, %v1154
      %v1156 = vpop.f32.mrb[0].mxu0
      %1157 = vmatprep.mubr.bf16.mxu0 0
      %1158 = vmatmul.mubr.bf16.gmra.mrb[0].mxu0 %v1033
      %v1159 = vpop.f32.mrb[0].mxu0
      %v1160 = vadd.f32 0.0, %v1159
      %v1161 = vpop.f32.mrb[0].mxu0
      %v1162 = vpop.f32.mrb[0].mxu0
      %v1163 = vadd.f32 0.0, %v1162
      %v1164 = vpop.f32.mrb[0].mxu0
      %1165 = vmatprep.mubr.bf16.mxu0 0
      %1166 = vmatmul.mubr.bf16.gmra.mrb[0].mxu0 %v1036
      %v1167 = vpop.f32.mrb[0].mxu0
      %v1168 = vadd.f32 0.0, %v1167
      %v1169 = vpop.f32.mrb[0].mxu0
      %v1170 = vpop.f32.mrb[0].mxu0
      %v1171 = vadd.f32 0.0, %v1170
      %v1172 = vpop.f32.mrb[0].mxu0
      %1173 = vmatprep.mubr.bf16.mxu0 0
      %1174 = vmatmul.mubr.bf16.gmra.mrb[0].mxu0 %v1039
      %v1175 = vpop.f32.mrb[0].mxu0
      %v1176 = vadd.f32 0.0, %v1175
      %v1177 = vpop.f32.mrb[0].mxu0
      %v1178 = vpop.f32.mrb[0].mxu0
      %v1179 = vadd.f32 0.0, %v1178
      %v1180 = vpop.f32.mrb[0].mxu0
      %1181 = vmatprep.mubr.bf16.mxu0 0
      %1182 = vmatmul.mubr.bf16.gmra.mrb[0].mxu0 %v1042
      %v1183 = vpop.f32.mrb[0].mxu0
      %v1184 = vadd.f32 0.0, %v1183
      %v1185 = vpop.f32.mrb[0].mxu0
      %v1186 = vpop.f32.mrb[0].mxu0
      %v1187 = vadd.f32 0.0, %v1186
      %v1188 = vpop.f32.mrb[0].mxu0
      %1189 = vmatprep.mubr.bf16.mxu0 0
      %1190 = vmatmul.mubr.bf16.gmra.mrb[0].mxu0 %v1045
      %v1191 = vpop.f32.mrb[0].mxu0
      %v1192 = vadd.f32 0.0, %v1191
      %v1193 = vpop.f32.mrb[0].mxu0
      %v1194 = vpop.f32.mrb[0].mxu0
      %v1195 = vadd.f32 0.0, %v1194
      %v1196 = vpop.f32.mrb[0].mxu0
      %1197 = vmatprep.mubr.bf16.mxu0 0
      %1198 = vmatmul.mubr.bf16.gmra.mrb[0].mxu0 %v1048
      %v1199 = vpop.f32.mrb[0].mxu0
      %v1200 = vadd.f32 0.0, %v1199
      %v1201 = vpop.f32.mrb[0].mxu0
      %v1202 = vpop.f32.mrb[0].mxu0
      %v1203 = vadd.f32 0.0, %v1202
      %v1204 = vpop.f32.mrb[0].mxu0
      %1205 = vmatprep.mubr.bf16.mxu0 0
      %1206 = vmatmul.mubr.bf16.gmra.mrb[0].mxu0 %v1051
      %v1207 = vpop.f32.mrb[0].mxu0
      %v1208 = vadd.f32 0.0, %v1207
      %v1209 = vpop.f32.mrb[0].mxu0
      %v1210 = vpop.f32.mrb[0].mxu0
      %v1211 = vadd.f32 0.0, %v1210
      %v1212 = vpop.f32.mrb[0].mxu0
      %1213 = vdwg.mxu0
      %v1214 = vld [vmem:[%s9] sm:$0xff]
      %v1215 = vld [vmem:[%s9 + $0x8] sm:$0xff]
      %v1216 = vld [vmem:[%s9 + $0x10] sm:$0xff]
      %v1217 = vld [vmem:[%s9 + $0x18] sm:$0xff]
      %v1218 = vld [vmem:[%s9 + $0x20] sm:$0xff]
      %v1219 = vld [vmem:[%s9 + $0x28] sm:$0xff]
      %v1220 = vld [vmem:[%s9 + $0x30] sm:$0xff]
      %v1221 = vld [vmem:[%s9 + $0x38] sm:$0xff]
      %v1222 = vld [vmem:[%s9 + $0x40] sm:$0xff]
      %v1223 = vld [vmem:[%s9 + $0x48] sm:$0xff]
      %v1224 = vld [vmem:[%s9 + $0x50] sm:$0xff]
      %v1225 = vld [vmem:[%s9 + $0x58] sm:$0xff]
      %v1226 = vld [vmem:[%s9 + $0x60] sm:$0xff]
      %v1227 = vld [vmem:[%s9 + $0x68] sm:$0xff]
      %v1228 = vld [vmem:[%s9 + $0x70] sm:$0xff]
      %v1229 = vld [vmem:[%s9 + $0x78] sm:$0xff]
      %v1230 = vld [vmem:[%s9 + $0x80] sm:$0xff]
      %v1231 = vld [vmem:[%s9 + $0x88] sm:$0xff]
      %v1232 = vld [vmem:[%s9 + $0x90] sm:$0xff]
      %v1233 = vld [vmem:[%s9 + $0x98] sm:$0xff]
      %v1234 = vld [vmem:[%s9 + $0xa0] sm:$0xff]
      %v1235 = vld [vmem:[%s9 + $0xa8] sm:$0xff]
      %v1236 = vld [vmem:[%s9 + $0xb0] sm:$0xff]
      %v1237 = vld [vmem:[%s9 + $0xb8] sm:$0xff]
      %v1238 = vld [vmem:[%s9 + $0xc0] sm:$0xff]
      %v1239 = vld [vmem:[%s9 + $0xc8] sm:$0xff]
      %v1240 = vld [vmem:[%s9 + $0xd0] sm:$0xff]
      %v1241 = vld [vmem:[%s9 + $0xd8] sm:$0xff]
      %v1242 = vld [vmem:[%s9 + $0xe0] sm:$0xff]
      %v1243 = vld [vmem:[%s9 + $0xe8] sm:$0xff]
      %v1244 = vld [vmem:[%s9 + $0xf0] sm:$0xff]
      %v1245 = vld [vmem:[%s9 + $0xf8] sm:$0xff]
      %v1246 = vld [vmem:[%s4] sm:$0xf]
      %v1247 = vld [vmem:[%s4 + $0x4] sm:$0xf]
      %v1248 = vld [vmem:[%s4 + $0x8] sm:$0xf]
      %v1249 = vld [vmem:[%s4 + $0xc] sm:$0xf]
      %v1250 = vpack.c.bf16 %v1091, %v1088
      %v1251 = vpack.c.bf16 %v1099, %v1096
      %v1252 = vpack.c.bf16 %v1107, %v1104
      %v1253 = vpack.c.bf16 %v1115, %v1112
      %v1254 = vpack.c.bf16 %v1123, %v1120
      %v1255 = vpack.c.bf16 %v1131, %v1128
      %v1256 = vpack.c.bf16 %v1139, %v1136
      %v1257 = vpack.c.bf16 %v1147, %v1144
      %v1258 = vpack.c.bf16 %v1155, %v1152
      %v1259 = vpack.c.bf16 %v1163, %v1160
      %v1260 = vpack.c.bf16 %v1171, %v1168
      %v1261 = vpack.c.bf16 %v1179, %v1176
      %v1262 = vpack.c.bf16 %v1187, %v1184
      %v1263 = vpack.c.bf16 %v1195, %v1192
      %v1264 = vpack.c.bf16 %v1203, %v1200
      %v1265 = vpack.c.bf16 %v1211, %v1208
      %v1270 = vunpack.c.l.b16 %v1246
      %v1271 = vunpack.c.l.b16 %v1247
      %v1272 = vunpack.c.l.b16 %v1248
      %v1273 = vunpack.c.l.b16 %v1249
      %v1274 = vpack.c.b16 %v1271, %v1270
      %v1275 = vpack.c.b16 %v1273, %v1272
      %v1279 = vsel %vm449, %v1250, 0
      %v1282 = vsel %vm449, %v1251, 0
      %v1285 = vsel %vm449, %v1252, 0
      %v1288 = vsel %vm449, %v1253, 0
      %v1291 = vsel %vm449, %v1254, 0
      %v1294 = vsel %vm449, %v1255, 0
      %v1297 = vsel %vm449, %v1256, 0
      %v1300 = vsel %vm449, %v1257, 0
      %v1303 = vsel %vm449, %v1258, 0
      %v1306 = vsel %vm449, %v1259, 0
      %v1309 = vsel %vm449, %v1260, 0
      %v1312 = vsel %vm449, %v1261, 0
      %v1315 = vsel %vm449, %v1262, 0
      %v1318 = vsel %vm449, %v1263, 0
      %v1321 = vsel %vm449, %v1264, 0
      %v1324 = vsel %vm449, %v1265, 0
      %1326 = vmatprep.subr.bf16.mxu0 0
      %1327 = vmatpush1.bf16.msra.mxu0 %v1274
      %1328 = vmatprep.subr.bf16.mxu0 0
      %1329 = vmatpush1.bf16.msra.mxu0 %v1275
      %1330 = vmatprep.subr.bf16.mxu0 0
      %1331 = vmatpush1.bf16.msra.mxu0 0
      %1332 = vmatprep.subr.bf16.mxu0 0
      %1333 = vmatpush1.bf16.msra.mxu0 0
      %1334 = vmatprep.subr.bf16.mxu0 0
      %1335 = vmatpush1.bf16.msra.mxu0 0
      %1336 = vmatprep.subr.bf16.mxu0 0
      %1337 = vmatpush1.bf16.msra.mxu0 0
      %1338 = vmatprep.subr.bf16.mxu0 0
      %1339 = vmatpush1.bf16.msra.mxu0 0
      %1340 = vmatprep.subr.bf16.mxu0 0
      %1341 = vmatpush1.bf16.msra.mxu0 0
      %1342 = vmatprep.subr.bf16.mxu0 0
      %1343 = vmatpush1.bf16.msra.mxu0 0
      %1344 = vmatprep.subr.bf16.mxu0 0
      %1345 = vmatpush1.bf16.msra.mxu0 0
      %1346 = vmatprep.subr.bf16.mxu0 0
      %1347 = vmatpush1.bf16.msra.mxu0 0
      %1348 = vmatprep.subr.bf16.mxu0 0
      %1349 = vmatpush1.bf16.msra.mxu0 0
      %1350 = vmatprep.subr.bf16.mxu0 0
      %1351 = vmatpush1.bf16.msra.mxu0 0
      %1352 = vmatprep.subr.bf16.mxu0 0
      %1353 = vmatpush1.bf16.msra.mxu0 0
      %1354 = vmatprep.subr.bf16.mxu0 0
      %1355 = vmatpush1.bf16.msra.mxu0 0
      %1356 = vmatprep.subr.bf16.mxu0 0
      %1357 = vmatpush1.bf16.msra.mxu0 0
      %1358 = vmatprep.mubr.bf16.mxu0 0
      %1359 = vmatmul.mubr.bf16.gmra.mrb[0].mxu0 %v1279
      %v1360 = vpop.f32.mrb[0].mxu0
      %v1361 = vadd.f32 0.0, %v1360
      %v1362 = vpop.f32.mrb[0].mxu0
      %v1363 = vpop.f32.mrb[0].mxu0
      %v1364 = vadd.f32 0.0, %v1363
      %v1365 = vpop.f32.mrb[0].mxu0
      %1366 = vmatprep.mubr.bf16.mxu0 0
      %1367 = vmatmul.mubr.bf16.gmra.mrb[0].mxu0 %v1282
      %v1368 = vpop.f32.mrb[0].mxu0
      %v1369 = vadd.f32 0.0, %v1368
      %v1370 = vpop.f32.mrb[0].mxu0
      %v1371 = vpop.f32.mrb[0].mxu0
      %v1372 = vadd.f32 0.0, %v1371
      %v1373 = vpop.f32.mrb[0].mxu0
      %1374 = vmatprep.mubr.bf16.mxu0 0
      %1375 = vmatmul.mubr.bf16.gmra.mrb[0].mxu0 %v1285
      %v1376 = vpop.f32.mrb[0].mxu0
      %v1377 = vadd.f32 0.0, %v1376
      %v1378 = vpop.f32.mrb[0].mxu0
      %v1379 = vpop.f32.mrb[0].mxu0
      %v1380 = vadd.f32 0.0, %v1379
      %v1381 = vpop.f32.mrb[0].mxu0
      %1382 = vmatprep.mubr.bf16.mxu0 0
      %1383 = vmatmul.mubr.bf16.gmra.mrb[0].mxu0 %v1288
      %v1384 = vpop.f32.mrb[0].mxu0
      %v1385 = vadd.f32 0.0, %v1384
      %v1386 = vpop.f32.mrb[0].mxu0
      %v1387 = vpop.f32.mrb[0].mxu0
      %v1388 = vadd.f32 0.0, %v1387
      %v1389 = vpop.f32.mrb[0].mxu0
      %1390 = vmatprep.mubr.bf16.mxu0 0
      %1391 = vmatmul.mubr.bf16.gmra.mrb[0].mxu0 %v1291
      %v1392 = vpop.f32.mrb[0].mxu0
      %v1393 = vadd.f32 0.0, %v1392
      %v1394 = vpop.f32.mrb[0].mxu0
      %v1395 = vpop.f32.mrb[0].mxu0
      %v1396 = vadd.f32 0.0, %v1395
      %v1397 = vpop.f32.mrb[0].mxu0
      %1398 = vmatprep.mubr.bf16.mxu0 0
      %1399 = vmatmul.mubr.bf16.gmra.mrb[0].mxu0 %v1294
      %v1400 = vpop.f32.mrb[0].mxu0
      %v1401 = vadd.f32 0.0, %v1400
      %v1402 = vpop.f32.mrb[0].mxu0
      %v1403 = vpop.f32.mrb[0].mxu0
      %v1404 = vadd.f32 0.0, %v1403
      %v1405 = vpop.f32.mrb[0].mxu0
      %1406 = vmatprep.mubr.bf16.mxu0 0
      %1407 = vmatmul.mubr.bf16.gmra.mrb[0].mxu0 %v1297
      %v1408 = vpop.f32.mrb[0].mxu0
      %v1409 = vadd.f32 0.0, %v1408
      %v1410 = vpop.f32.mrb[0].mxu0
      %v1411 = vpop.f32.mrb[0].mxu0
      %v1412 = vadd.f32 0.0, %v1411
      %v1413 = vpop.f32.mrb[0].mxu0
      %1414 = vmatprep.mubr.bf16.mxu0 0
      %1415 = vmatmul.mubr.bf16.gmra.mrb[0].mxu0 %v1300
      %v1416 = vpop.f32.mrb[0].mxu0
      %v1417 = vadd.f32 0.0, %v1416
      %v1418 = vpop.f32.mrb[0].mxu0
      %v1419 = vpop.f32.mrb[0].mxu0
      %v1420 = vadd.f32 0.0, %v1419
      %v1421 = vpop.f32.mrb[0].mxu0
      %1422 = vmatprep.mubr.bf16.mxu0 0
      %1423 = vmatmul.mubr.bf16.gmra.mrb[0].mxu0 %v1303
      %v1424 = vpop.f32.mrb[0].mxu0
      %v1425 = vadd.f32 0.0, %v1424
      %v1426 = vpop.f32.mrb[0].mxu0
      %v1427 = vpop.f32.mrb[0].mxu0
      %v1428 = vadd.f32 0.0, %v1427
      %v1429 = vpop.f32.mrb[0].mxu0
      %1430 = vmatprep.mubr.bf16.mxu0 0
      %1431 = vmatmul.mubr.bf16.gmra.mrb[0].mxu0 %v1306
      %v1432 = vpop.f32.mrb[0].mxu0
      %v1433 = vadd.f32 0.0, %v1432
      %v1434 = vpop.f32.mrb[0].mxu0
      %v1435 = vpop.f32.mrb[0].mxu0
      %v1436 = vadd.f32 0.0, %v1435
      %v1437 = vpop.f32.mrb[0].mxu0
      %1438 = vmatprep.mubr.bf16.mxu0 0
      %1439 = vmatmul.mubr.bf16.gmra.mrb[0].mxu0 %v1309
      %v1440 = vpop.f32.mrb[0].mxu0
      %v1441 = vadd.f32 0.0, %v1440
      %v1442 = vpop.f32.mrb[0].mxu0
      %v1443 = vpop.f32.mrb[0].mxu0
      %v1444 = vadd.f32 0.0, %v1443
      %v1445 = vpop.f32.mrb[0].mxu0
      %1446 = vmatprep.mubr.bf16.mxu0 0
      %1447 = vmatmul.mubr.bf16.gmra.mrb[0].mxu0 %v1312
      %v1448 = vpop.f32.mrb[0].mxu0
      %v1449 = vadd.f32 0.0, %v1448
      %v1450 = vpop.f32.mrb[0].mxu0
      %v1451 = vpop.f32.mrb[0].mxu0
      %v1452 = vadd.f32 0.0, %v1451
      %v1453 = vpop.f32.mrb[0].mxu0
      %1454 = vmatprep.mubr.bf16.mxu0 0
      %1455 = vmatmul.mubr.bf16.gmra.mrb[0].mxu0 %v1315
      %v1456 = vpop.f32.mrb[0].mxu0
      %v1457 = vadd.f32 0.0, %v1456
      %v1458 = vpop.f32.mrb[0].mxu0
      %v1459 = vpop.f32.mrb[0].mxu0
      %v1460 = vadd.f32 0.0, %v1459
      %v1461 = vpop.f32.mrb[0].mxu0
      %1462 = vmatprep.mubr.bf16.mxu0 0
      %1463 = vmatmul.mubr.bf16.gmra.mrb[0].mxu0 %v1318
      %v1464 = vpop.f32.mrb[0].mxu0
      %v1465 = vadd.f32 0.0, %v1464
      %v1466 = vpop.f32.mrb[0].mxu0
      %v1467 = vpop.f32.mrb[0].mxu0
      %v1468 = vadd.f32 0.0, %v1467
      %v1469 = vpop.f32.mrb[0].mxu0
      %1470 = vmatprep.mubr.bf16.mxu0 0
      %1471 = vmatmul.mubr.bf16.gmra.mrb[0].mxu0 %v1321
      %v1472 = vpop.f32.mrb[0].mxu0
      %v1473 = vadd.f32 0.0, %v1472
      %v1474 = vpop.f32.mrb[0].mxu0
      %v1475 = vpop.f32.mrb[0].mxu0
      %v1476 = vadd.f32 0.0, %v1475
      %v1477 = vpop.f32.mrb[0].mxu0
      %1478 = vmatprep.mubr.bf16.mxu0 0
      %1479 = vmatmul.mubr.bf16.gmra.mrb[0].mxu0 %v1324
      %v1480 = vpop.f32.mrb[0].mxu0
      %v1481 = vadd.f32 0.0, %v1480
      %v1482 = vpop.f32.mrb[0].mxu0
      %v1483 = vpop.f32.mrb[0].mxu0
      %v1484 = vadd.f32 0.0, %v1483
      %v1485 = vpop.f32.mrb[0].mxu0
      %1486 = vdwg.mxu0
      %v1487 = vmul.f32 %v1361, %v1214
      %v1488 = vmul.f32 %v1364, %v1215
      %v1489 = vmul.f32 %v1369, %v1216
      %v1490 = vmul.f32 %v1372, %v1217
      %v1491 = vmul.f32 %v1377, %v1218
      %v1492 = vmul.f32 %v1380, %v1219
      %v1493 = vmul.f32 %v1385, %v1220
      %v1494 = vmul.f32 %v1388, %v1221
      %v1495 = vmul.f32 %v1393, %v1222
      %v1496 = vmul.f32 %v1396, %v1223
      %v1497 = vmul.f32 %v1401, %v1224
      %v1498 = vmul.f32 %v1404, %v1225
      %v1499 = vmul.f32 %v1409, %v1226
      %v1500 = vmul.f32 %v1412, %v1227
      %v1501 = vmul.f32 %v1417, %v1228
      %v1502 = vmul.f32 %v1420, %v1229
      %v1503 = vmul.f32 %v1425, %v1230
      %v1504 = vmul.f32 %v1428, %v1231
      %v1505 = vmul.f32 %v1433, %v1232
      %v1506 = vmul.f32 %v1436, %v1233
      %v1507 = vmul.f32 %v1441, %v1234
      %v1508 = vmul.f32 %v1444, %v1235
      %v1509 = vmul.f32 %v1449, %v1236
      %v1510 = vmul.f32 %v1452, %v1237
      %v1511 = vmul.f32 %v1457, %v1238
      %v1512 = vmul.f32 %v1460, %v1239
      %v1513 = vmul.f32 %v1465, %v1240
      %v1514 = vmul.f32 %v1468, %v1241
      %v1515 = vmul.f32 %v1473, %v1242
      %v1516 = vmul.f32 %v1476, %v1243
      %v1517 = vmul.f32 %v1481, %v1244
      %v1518 = vmul.f32 %v1484, %v1245
      %v1519 = vpack.c.bf16 %v1488, %v1487
      %v1520 = vpack.c.bf16 %v1490, %v1489
      %v1521 = vpack.c.bf16 %v1492, %v1491
      %v1522 = vpack.c.bf16 %v1494, %v1493
      %v1523 = vpack.c.bf16 %v1496, %v1495
      %v1524 = vpack.c.bf16 %v1498, %v1497
      %v1525 = vpack.c.bf16 %v1500, %v1499
      %v1526 = vpack.c.bf16 %v1502, %v1501
      %v1527 = vpack.c.bf16 %v1504, %v1503
      %v1528 = vpack.c.bf16 %v1506, %v1505
      %v1529 = vpack.c.bf16 %v1508, %v1507
      %v1530 = vpack.c.bf16 %v1510, %v1509
      %v1531 = vpack.c.bf16 %v1512, %v1511
      %v1532 = vpack.c.bf16 %v1514, %v1513
      %v1533 = vpack.c.bf16 %v1516, %v1515
      %v1534 = vpack.c.bf16 %v1518, %v1517
      %v1535 = vpack.c.bf16 %v1215, %v1214
      %v1536 = vpack.c.bf16 %v1217, %v1216
      %v1537 = vpack.c.bf16 %v1219, %v1218
      %v1538 = vpack.c.bf16 %v1221, %v1220
      %v1539 = vpack.c.bf16 %v1223, %v1222
      %v1540 = vpack.c.bf16 %v1225, %v1224
      %v1541 = vpack.c.bf16 %v1227, %v1226
      %v1542 = vpack.c.bf16 %v1229, %v1228
      %v1543 = vpack.c.bf16 %v1231, %v1230
      %v1544 = vpack.c.bf16 %v1233, %v1232
      %v1545 = vpack.c.bf16 %v1235, %v1234
      %v1546 = vpack.c.bf16 %v1237, %v1236
      %v1547 = vpack.c.bf16 %v1239, %v1238
      %v1548 = vpack.c.bf16 %v1241, %v1240
      %v1549 = vpack.c.bf16 %v1243, %v1242
      %v1550 = vpack.c.bf16 %v1245, %v1244
      %v1551 = vld [vmem:[%s10] sm:$0xff]
      %v1552 = vld [vmem:[%s10 + $0x8] sm:$0xff]
      %v1553 = vld [vmem:[%s10 + $0x10] sm:$0xff]
      %v1554 = vld [vmem:[%s10 + $0x18] sm:$0xff]
      %v1555 = vld [vmem:[%s10 + $0x20] sm:$0xff]
      %v1556 = vld [vmem:[%s10 + $0x28] sm:$0xff]
      %v1557 = vld [vmem:[%s10 + $0x30] sm:$0xff]
      %v1558 = vld [vmem:[%s10 + $0x38] sm:$0xff]
      %v1559 = vsel %vm449, %v505, 0.0
      %1560 = vadd.xlane.f32.xlu0 %v1559
      %v1561 = vpop.xlane.xlu0 %1560
      %v1562 = vsel %vm449, %v506, 0.0
      %1563 = vadd.xlane.f32.xlu0 %v1562
      %v1564 = vpop.xlane.xlu0 %1563
      %v1565 = vsel %vm449, %v507, 0.0
      %1566 = vadd.xlane.f32.xlu0 %v1565
      %v1567 = vpop.xlane.xlu0 %1566
      %v1568 = vsel %vm449, %v508, 0.0
      %1569 = vadd.xlane.f32.xlu0 %v1568
      %v1570 = vpop.xlane.xlu0 %1569
      %v1571 = vrcp.pop 32.0
      %v1572 = vmul.f32 %v1561, %v1571
      %v1573 = vmul.f32 %v1564, %v1571
      %v1574 = vmul.f32 %v1567, %v1571
      %v1575 = vmul.f32 %v1570, %v1571
      %v1576 = vsub.f32 %v505, %v1572
      %v1577 = vsub.f32 %v506, %v1573
      %v1578 = vsub.f32 %v507, %v1574
      %v1579 = vsub.f32 %v508, %v1575
      %v1580 = vmul.f32 %v1576, %v1576
      %v1581 = vmul.f32 %v1577, %v1577
      %v1582 = vmul.f32 %v1578, %v1578
      %v1583 = vmul.f32 %v1579, %v1579
      %v1584 = vsel %vm449, %v1580, 0.0
      %1585 = vadd.xlane.f32.xlu0 %v1584
      %v1586 = vpop.xlane.xlu0 %1585
      %v1587 = vsel %vm449, %v1581, 0.0
      %1588 = vadd.xlane.f32.xlu0 %v1587
      %v1589 = vpop.xlane.xlu0 %1588
      %v1590 = vsel %vm449, %v1582, 0.0
      %1591 = vadd.xlane.f32.xlu0 %v1590
      %v1592 = vpop.xlane.xlu0 %1591
      %v1593 = vsel %vm449, %v1583, 0.0
      %1594 = vadd.xlane.f32.xlu0 %v1593
      %v1595 = vpop.xlane.xlu0 %1594
      %v1596 = vmul.f32 %v1586, %v1571
      %v1597 = vmul.f32 %v1589, %v1571
      %v1598 = vmul.f32 %v1592, %v1571
      %v1599 = vmul.f32 %v1595, %v1571
      %v1600 = vadd.f32 %v1596, 1e-05
      %v1601 = vadd.f32 %v1597, 1e-05
      %v1602 = vadd.f32 %v1598, 1e-05
      %v1603 = vadd.f32 %v1599, 1e-05
      %v1604 = vrsqrt.pop %v1600
      %v1605 = vrsqrt.pop %v1601
      %v1606 = vrsqrt.pop %v1602
      %v1607 = vrsqrt.pop %v1603
      %v1608 = vmul.f32 %v1576, %v1604
      %v1609 = vmul.f32 %v1577, %v1605
      %v1610 = vmul.f32 %v1578, %v1606
      %v1611 = vmul.f32 %v1579, %v1607
      %v1612 = vlaneseq
      %v1613 = vshrl.u32 %v1612, 7
      %v1614 = vsub.s32 3, %v1613
      %v1615 = vrot.slane %v413, %v1614
      %v1616 = vmul.f32 %v1608, %v1615
      %v1617 = vmul.f32 %v1609, %v1615
      %v1618 = vmul.f32 %v1610, %v1615
      %v1619 = vmul.f32 %v1611, %v1615
      %v1620 = vlaneseq
      %v1621 = vshrl.u32 %v1620, 7
      %v1622 = vsub.s32 4, %v1621
      %v1623 = vrot.slane %v413, %v1622
      %v1624 = vadd.f32 %v1616, %v1623
      %v1625 = vadd.f32 %v1617, %v1623
      %v1626 = vadd.f32 %v1618, %v1623
      %v1627 = vadd.f32 %v1619, %v1623
      %s1628 = scalar_lea.vmem %s3, 32
      %v1629 = vld [vmem:[%s1628] sm:$0xf]
      %v1630 = vld [vmem:[%s1628 + $0x4] sm:$0xf]
      %v1631 = vld [vmem:[%s1628 + $0x8] sm:$0xf]
      %v1632 = vld [vmem:[%s1628 + $0xc] sm:$0xf]
      %v1633 = vpack.c.bf16 %v1625, %v1624
      %v1634 = vpack.c.bf16 %v1627, %v1626
      %v1635 = vlaneseq
      %v1636 = vshrl.u32 %v1635, 7
      %v1637 = vsub.s32 5, %v1636
      %v1638 = vrot.slane %v413, %v1637
      %v1643 = vunpack.c.l.b16 %v1629
      %v1644 = vunpack.c.l.b16 %v1630
      %v1645 = vunpack.c.l.b16 %v1631
      %v1646 = vunpack.c.l.b16 %v1632
      %v1647 = vpack.c.b16 %v1644, %v1643
      %v1648 = vpack.c.b16 %v1646, %v1645
      %v1652 = vsel %vm449, %v1633, 0
      %v1655 = vsel %vm449, %v1634, 0
      %1657 = vmatprep.subr.bf16.mxu0 0
      %1658 = vmatpush1.bf16.msra.mxu0 %v1647
      %1659 = vmatprep.subr.bf16.mxu0 0
      %1660 = vmatpush1.bf16.msra.mxu0 %v1648
      %1661 = vmatprep.subr.bf16.mxu0 0
      %1662 = vmatpush1.bf16.msra.mxu0 0
      %1663 = vmatprep.subr.bf16.mxu0 0
      %1664 = vmatpush1.bf16.msra.mxu0 0
      %1665 = vmatprep.subr.bf16.mxu0 0
      %1666 = vmatpush1.bf16.msra.mxu0 0
      %1667 = vmatprep.subr.bf16.mxu0 0
      %1668 = vmatpush1.bf16.msra.mxu0 0
      %1669 = vmatprep.subr.bf16.mxu0 0
      %1670 = vmatpush1.bf16.msra.mxu0 0
      %1671 = vmatprep.subr.bf16.mxu0 0
      %1672 = vmatpush1.bf16.msra.mxu0 0
      %1673 = vmatprep.subr.bf16.mxu0 0
      %1674 = vmatpush1.bf16.msra.mxu0 0
      %1675 = vmatprep.subr.bf16.mxu0 0
      %1676 = vmatpush1.bf16.msra.mxu0 0
      %1677 = vmatprep.subr.bf16.mxu0 0
      %1678 = vmatpush1.bf16.msra.mxu0 0
      %1679 = vmatprep.subr.bf16.mxu0 0
      %1680 = vmatpush1.bf16.msra.mxu0 0
      %1681 = vmatprep.subr.bf16.mxu0 0
      %1682 = vmatpush1.bf16.msra.mxu0 0
      %1683 = vmatprep.subr.bf16.mxu0 0
      %1684 = vmatpush1.bf16.msra.mxu0 0
      %1685 = vmatprep.subr.bf16.mxu0 0
      %1686 = vmatpush1.bf16.msra.mxu0 0
      %1687 = vmatprep.subr.bf16.mxu0 0
      %1688 = vmatpush1.bf16.msra.mxu0 0
      %1689 = vmatprep.mubr.bf16.mxu0 0
      %1690 = vmatmul.mubr.bf16.gmra.mrb[0].mxu0 %v1652
      %v1691 = vpop.f32.mrb[0].mxu0
      %v1692 = vadd.f32 %v1638, %v1691
      %v1693 = vpop.f32.mrb[0].mxu0
      %v1694 = vpop.f32.mrb[0].mxu0
      %v1695 = vadd.f32 %v1638, %v1694
      %v1696 = vpop.f32.mrb[0].mxu0
      %1697 = vmatprep.mubr.bf16.mxu0 0
      %1698 = vmatmul.mubr.bf16.gmra.mrb[0].mxu0 %v1655
      %v1699 = vpop.f32.mrb[0].mxu0
      %v1700 = vadd.f32 %v1638, %v1699
      %v1701 = vpop.f32.mrb[0].mxu0
      %v1702 = vpop.f32.mrb[0].mxu0
      %v1703 = vadd.f32 %v1638, %v1702
      %v1704 = vpop.f32.mrb[0].mxu0
      %1705 = vdwg.mxu0
      %v1706 = vpack.c.bf16 %v1695, %v1692
      %v1707 = vpack.c.bf16 %v1703, %v1700
      %v1709 = vsel %vm449, %v1706, 0
      %v1712 = vsel %vm449, %v1707, 0
      %1714 = vmatprep.subr.bf16.mxu0 %v884
      %1715 = vmatpush1.bf16.msra.mxu0 %v883
      %1716 = vmatprep.subr.bf16.mxu0 %v886
      %1717 = vmatpush1.bf16.msra.mxu0 %v885
      %1718 = vmatprep.subr.bf16.mxu0 0
      %1719 = vmatpush1.bf16.msra.mxu0 0
      %1720 = vmatprep.subr.bf16.mxu0 0
      %1721 = vmatpush1.bf16.msra.mxu0 0
      %1722 = vmatprep.subr.bf16.mxu0 0
      %1723 = vmatpush1.bf16.msra.mxu0 0
      %1724 = vmatprep.subr.bf16.mxu0 0
      %1725 = vmatpush1.bf16.msra.mxu0 0
      %1726 = vmatprep.subr.bf16.mxu0 0
      %1727 = vmatpush1.bf16.msra.mxu0 0
      %1728 = vmatprep.subr.bf16.mxu0 0
      %1729 = vmatpush1.bf16.msra.mxu0 0
      %1730 = vmatprep.subr.bf16.mxu0 0
      %1731 = vmatpush1.bf16.msra.mxu0 0
      %1732 = vmatprep.subr.bf16.mxu0 0
      %1733 = vmatpush1.bf16.msra.mxu0 0
      %1734 = vmatprep.subr.bf16.mxu0 0
      %1735 = vmatpush1.bf16.msra.mxu0 0
      %1736 = vmatprep.subr.bf16.mxu0 0
      %1737 = vmatpush1.bf16.msra.mxu0 0
      %1738 = vmatprep.subr.bf16.mxu0 0
      %1739 = vmatpush1.bf16.msra.mxu0 0
      %1740 = vmatprep.subr.bf16.mxu0 0
      %1741 = vmatpush1.bf16.msra.mxu0 0
      %1742 = vmatprep.subr.bf16.mxu0 0
      %1743 = vmatpush1.bf16.msra.mxu0 0
      %1744 = vmatprep.subr.bf16.mxu0 0
      %1745 = vmatpush1.bf16.msra.mxu0 0
      %1746 = vmatprep.mubr.bf16.mxu0 0
      %1747 = vmatmul.mubr.bf16.gmra.mrb[0].mxu0 %v1709
      %v1748 = vpop.f32.mrb[0].mxu0
      %v1749 = vadd.f32 %v1551, %v1748
      %v1750 = vpop.f32.mrb[0].mxu0
      %v1751 = vadd.f32 %v1552, %v1750
      %v1752 = vpop.f32.mrb[0].mxu0
      %v1753 = vadd.f32 %v1553, %v1752
      %v1754 = vpop.f32.mrb[0].mxu0
      %v1755 = vadd.f32 %v1554, %v1754
      %1756 = vmatprep.mubr.bf16.mxu0 0
      %1757 = vmatmul.mubr.bf16.gmra.mrb[0].mxu0 %v1712
      %v1758 = vpop.f32.mrb[0].mxu0
      %v1759 = vadd.f32 %v1555, %v1758
      %v1760 = vpop.f32.mrb[0].mxu0
      %v1761 = vadd.f32 %v1556, %v1760
      %v1762 = vpop.f32.mrb[0].mxu0
      %v1763 = vadd.f32 %v1557, %v1762
      %v1764 = vpop.f32.mrb[0].mxu0
      %v1765 = vadd.f32 %v1558, %v1764
      %1766 = vdwg.mxu0
      %v1767 = vmax.f32 %v1749, %v1751
      %1768 = vmax.xlane.f32.xlu0 %v1767
      %v1769 = vpop.xlane.xlu0 %1768
      %v1770 = vmax.f32 %v1753, %v1755
      %1771 = vmax.xlane.f32.xlu0 %v1770
      %v1772 = vpop.xlane.xlu0 %1771
      %v1773 = vmax.f32 %v1759, %v1761
      %1774 = vmax.xlane.f32.xlu0 %v1773
      %v1775 = vpop.xlane.xlu0 %1774
      %v1776 = vmax.f32 %v1763, %v1765
      %1777 = vmax.xlane.f32.xlu0 %v1776
      %v1778 = vpop.xlane.xlu0 %1777
      %v1779 = vsub.f32 %v1749, %v1769
      %v1780 = vsub.f32 %v1751, %v1769
      %v1781 = vsub.f32 %v1753, %v1772
      %v1782 = vsub.f32 %v1755, %v1772
      %v1783 = vsub.f32 %v1759, %v1775
      %v1784 = vsub.f32 %v1761, %v1775
      %v1785 = vsub.f32 %v1763, %v1778
      %v1786 = vsub.f32 %v1765, %v1778
      %v1787 = vmul.f32 %v1779, 1.442695
      %v1788 = vpow.pop %v1787
      %v1789 = vmul.f32 %v1780, 1.442695
      %v1790 = vpow.pop %v1789
      %v1791 = vmul.f32 %v1781, 1.442695
      %v1792 = vpow.pop %v1791
      %v1793 = vmul.f32 %v1782, 1.442695
      %v1794 = vpow.pop %v1793
      %v1795 = vmul.f32 %v1783, 1.442695
      %v1796 = vpow.pop %v1795
      %v1797 = vmul.f32 %v1784, 1.442695
      %v1798 = vpow.pop %v1797
      %v1799 = vmul.f32 %v1785, 1.442695
      %v1800 = vpow.pop %v1799
      %v1801 = vmul.f32 %v1786, 1.442695
      %v1802 = vpow.pop %v1801
      %v1803 = vpack.c.bf16 %v1792, %v1788
      %v1804 = vpack.c.bf16 %v1794, %v1790
      %v1805 = vpack.c.bf16 %v1800, %v1796
      %v1806 = vpack.c.bf16 %v1802, %v1798
      %1807 = vmatprep.subr.bf16.mxu0 0
      %1808 = vmatpush1.bf16.msra.mxu0 %v1535
      %1809 = vmatprep.subr.bf16.mxu0 0
      %1810 = vmatpush1.bf16.msra.mxu0 %v1536
      %1811 = vmatprep.subr.bf16.mxu0 0
      %1812 = vmatpush1.bf16.msra.mxu0 %v1537
      %1813 = vmatprep.subr.bf16.mxu0 0
      %1814 = vmatpush1.bf16.msra.mxu0 %v1538
      %1815 = vmatprep.subr.bf16.mxu0 0
      %1816 = vmatpush1.bf16.msra.mxu0 %v1539
      %1817 = vmatprep.subr.bf16.mxu0 0
      %1818 = vmatpush1.bf16.msra.mxu0 %v1540
      %1819 = vmatprep.subr.bf16.mxu0 0
      %1820 = vmatpush1.bf16.msra.mxu0 %v1541
      %1821 = vmatprep.subr.bf16.mxu0 0
      %1822 = vmatpush1.bf16.msra.mxu0 %v1542
      %1823 = vmatprep.subr.bf16.mxu0 0
      %1824 = vmatpush1.bf16.msra.mxu0 %v1543
      %1825 = vmatprep.subr.bf16.mxu0 0
      %1826 = vmatpush1.bf16.msra.mxu0 %v1544
      %1827 = vmatprep.subr.bf16.mxu0 0
      %1828 = vmatpush1.bf16.msra.mxu0 %v1545
      %1829 = vmatprep.subr.bf16.mxu0 0
      %1830 = vmatpush1.bf16.msra.mxu0 %v1546
      %1831 = vmatprep.subr.bf16.mxu0 0
      %1832 = vmatpush1.bf16.msra.mxu0 %v1547
      %1833 = vmatprep.subr.bf16.mxu0 0
      %1834 = vmatpush1.bf16.msra.mxu0 %v1548
      %1835 = vmatprep.subr.bf16.mxu0 0
      %1836 = vmatpush1.bf16.msra.mxu0 %v1549
      %1837 = vmatprep.subr.bf16.mxu0 0
      %1838 = vmatpush1.bf16.msra.mxu0 %v1550
      %1839 = vmatprep.mubr.bf16.mxu0 %v1804
      %1840 = vmatmul.mubr.bf16.gmra.mrb[0].mxu0 %v1803
      %v1841 = vpop.f32.mrb[0].mxu0
      %v1842 = vadd.f32 0.0, %v1841
      %v1843 = vpop.f32.mrb[0].mxu0
      %v1844 = vpop.f32.mrb[0].mxu0
      %v1845 = vadd.f32 0.0, %v1844
      %v1846 = vpop.f32.mrb[0].mxu0
      %1847 = vmatprep.mubr.bf16.mxu0 %v1806
      %1848 = vmatmul.mubr.bf16.gmra.mrb[0].mxu0 %v1805
      %v1849 = vpop.f32.mrb[0].mxu0
      %v1850 = vadd.f32 0.0, %v1849
      %v1851 = vpop.f32.mrb[0].mxu0
      %v1852 = vpop.f32.mrb[0].mxu0
      %v1853 = vadd.f32 0.0, %v1852
      %v1854 = vpop.f32.mrb[0].mxu0
      %1855 = vdwg.mxu0
      %1856 = vmatprep.subr.bf16.mxu0 0
      %1857 = vmatpush1.bf16.msra.mxu0 %v1519
      %1858 = vmatprep.subr.bf16.mxu0 0
      %1859 = vmatpush1.bf16.msra.mxu0 %v1520
      %1860 = vmatprep.subr.bf16.mxu0 0
      %1861 = vmatpush1.bf16.msra.mxu0 %v1521
      %1862 = vmatprep.subr.bf16.mxu0 0
      %1863 = vmatpush1.bf16.msra.mxu0 %v1522
      %1864 = vmatprep.subr.bf16.mxu0 0
      %1865 = vmatpush1.bf16.msra.mxu0 %v1523
      %1866 = vmatprep.subr.bf16.mxu0 0
      %1867 = vmatpush1.bf16.msra.mxu0 %v1524
      %1868 = vmatprep.subr.bf16.mxu0 0
      %1869 = vmatpush1.bf16.msra.mxu0 %v1525
      %1870 = vmatprep.subr.bf16.mxu0 0
      %1871 = vmatpush1.bf16.msra.mxu0 %v1526
      %1872 = vmatprep.subr.bf16.mxu0 0
      %1873 = vmatpush1.bf16.msra.mxu0 %v1527
      %1874 = vmatprep.subr.bf16.mxu0 0
      %1875 = vmatpush1.bf16.msra.mxu0 %v1528
      %1876 = vmatprep.subr.bf16.mxu0 0
      %1877 = vmatpush1.bf16.msra.mxu0 %v1529
      %1878 = vmatprep.subr.bf16.mxu0 0
      %1879 = vmatpush1.bf16.msra.mxu0 %v1530
      %1880 = vmatprep.subr.bf16.mxu0 0
      %1881 = vmatpush1.bf16.msra.mxu0 %v1531
      %1882 = vmatprep.subr.bf16.mxu0 0
      %1883 = vmatpush1.bf16.msra.mxu0 %v1532
      %1884 = vmatprep.subr.bf16.mxu0 0
      %1885 = vmatpush1.bf16.msra.mxu0 %v1533
      %1886 = vmatprep.subr.bf16.mxu0 0
      %1887 = vmatpush1.bf16.msra.mxu0 %v1534
      %1888 = vmatprep.mubr.bf16.mxu0 %v1804
      %1889 = vmatmul.mubr.bf16.gmra.mrb[0].mxu0 %v1803
      %v1890 = vpop.f32.mrb[0].mxu0
      %v1891 = vadd.f32 0.0, %v1890
      %v1892 = vpop.f32.mrb[0].mxu0
      %v1893 = vpop.f32.mrb[0].mxu0
      %v1894 = vadd.f32 0.0, %v1893
      %v1895 = vpop.f32.mrb[0].mxu0
      %1896 = vmatprep.mubr.bf16.mxu0 %v1806
      %1897 = vmatmul.mubr.bf16.gmra.mrb[0].mxu0 %v1805
      %v1898 = vpop.f32.mrb[0].mxu0
      %v1899 = vadd.f32 0.0, %v1898
      %v1900 = vpop.f32.mrb[0].mxu0
      %v1901 = vpop.f32.mrb[0].mxu0
      %v1902 = vadd.f32 0.0, %v1901
      %v1903 = vpop.f32.mrb[0].mxu0
      %1904 = vdwg.mxu0
      %v1905 = vrcp.pop %v1842
      %v1906 = vmul.f32 %v1891, %v1905
      %v1907 = vrcp.pop %v1845
      %v1908 = vmul.f32 %v1894, %v1907
      %v1909 = vrcp.pop %v1850
      %v1910 = vmul.f32 %v1899, %v1909
      %v1911 = vrcp.pop %v1853
      %v1912 = vmul.f32 %v1902, %v1911
      %v1913 = vlaneseq
      %v1914 = vshrl.u32 %v1913, 7
      %v1915 = vsub.s32 7, %v1914
      %v1916 = vrot.slane %v413, %v1915
      %v1917 = vadd.f32 %v1906, %v1916
      %v1918 = vadd.f32 %v1908, %v1916
      %v1919 = vadd.f32 %v1910, %v1916
      %v1920 = vadd.f32 %v1912, %v1916
      %s1921 = scalar_lea.vmem %s3, 64
      %v1922 = vld [vmem:[%s1921] sm:$0xf]
      %v1923 = vld [vmem:[%s1921 + $0x4] sm:$0xf]
      %v1924 = vld [vmem:[%s1921 + $0x8] sm:$0xf]
      %v1925 = vld [vmem:[%s1921 + $0xc] sm:$0xf]
      %v1926 = vpack.c.bf16 %v1918, %v1917
      %v1927 = vpack.c.bf16 %v1920, %v1919
      %v1928 = vlaneseq
      %v1929 = vshrl.u32 %v1928, 7
      %v1930 = vsub.s32 1, %v1929
      %v1931 = vrot.slane %v414, %v1930
      %v1936 = vunpack.c.l.b16 %v1922
      %v1937 = vunpack.c.l.b16 %v1923
      %v1938 = vunpack.c.l.b16 %v1924
      %v1939 = vunpack.c.l.b16 %v1925
      %v1940 = vpack.c.b16 %v1937, %v1936
      %v1941 = vpack.c.b16 %v1939, %v1938
      %v1945 = vsel %vm449, %v1926, 0
      %v1948 = vsel %vm449, %v1927, 0
      %1950 = vmatprep.subr.bf16.mxu0 0
      %1951 = vmatpush1.bf16.msra.mxu0 %v1940
      %1952 = vmatprep.subr.bf16.mxu0 0
      %1953 = vmatpush1.bf16.msra.mxu0 %v1941
      %1954 = vmatprep.subr.bf16.mxu0 0
      %1955 = vmatpush1.bf16.msra.mxu0 0
      %1956 = vmatprep.subr.bf16.mxu0 0
      %1957 = vmatpush1.bf16.msra.mxu0 0
      %1958 = vmatprep.subr.bf16.mxu0 0
      %1959 = vmatpush1.bf16.msra.mxu0 0
      %1960 = vmatprep.subr.bf16.mxu0 0
      %1961 = vmatpush1.bf16.msra.mxu0 0
      %1962 = vmatprep.subr.bf16.mxu0 0
      %1963 = vmatpush1.bf16.msra.mxu0 0
      %1964 = vmatprep.subr.bf16.mxu0 0
      %1965 = vmatpush1.bf16.msra.mxu0 0
      %1966 = vmatprep.subr.bf16.mxu0 0
      %1967 = vmatpush1.bf16.msra.mxu0 0
      %1968 = vmatprep.subr.bf16.mxu0 0
      %1969 = vmatpush1.bf16.msra.mxu0 0
      %1970 = vmatprep.subr.bf16.mxu0 0
      %1971 = vmatpush1.bf16.msra.mxu0 0
      %1972 = vmatprep.subr.bf16.mxu0 0
      %1973 = vmatpush1.bf16.msra.mxu0 0
      %1974 = vmatprep.subr.bf16.mxu0 0
      %1975 = vmatpush1.bf16.msra.mxu0 0
      %1976 = vmatprep.subr.bf16.mxu0 0
      %1977 = vmatpush1.bf16.msra.mxu0 0
      %1978 = vmatprep.subr.bf16.mxu0 0
      %1979 = vmatpush1.bf16.msra.mxu0 0
      %1980 = vmatprep.subr.bf16.mxu0 0
      %1981 = vmatpush1.bf16.msra.mxu0 0
      %1982 = vmatprep.mubr.bf16.mxu0 0
      %1983 = vmatmul.mubr.bf16.gmra.mrb[0].mxu0 %v1945
      %v1984 = vpop.f32.mrb[0].mxu0
      %v1985 = vadd.f32 %v1931, %v1984
      %v1986 = vpop.f32.mrb[0].mxu0
      %v1987 = vpop.f32.mrb[0].mxu0
      %v1988 = vadd.f32 %v1931, %v1987
      %v1989 = vpop.f32.mrb[0].mxu0
      %1990 = vmatprep.mubr.bf16.mxu0 0
      %1991 = vmatmul.mubr.bf16.gmra.mrb[0].mxu0 %v1948
      %v1992 = vpop.f32.mrb[0].mxu0
      %v1993 = vadd.f32 %v1931, %v1992
      %v1994 = vpop.f32.mrb[0].mxu0
      %v1995 = vpop.f32.mrb[0].mxu0
      %v1996 = vadd.f32 %v1931, %v1995
      %v1997 = vpop.f32.mrb[0].mxu0
      %1998 = vdwg.mxu0
      %v1999 = vsel %vm449, %v1985, 0.0
      %2000 = vadd.xlane.f32.xlu0 %v1999
      %v2001 = vpop.xlane.xlu0 %2000
      %v2002 = vsel %vm449, %v1988, 0.0
      %2003 = vadd.xlane.f32.xlu0 %v2002
      %v2004 = vpop.xlane.xlu0 %2003
      %v2005 = vsel %vm449, %v1993, 0.0
      %2006 = vadd.xlane.f32.xlu0 %v2005
      %v2007 = vpop.xlane.xlu0 %2006
      %v2008 = vsel %vm449, %v1996, 0.0
      %2009 = vadd.xlane.f32.xlu0 %v2008
      %v2010 = vpop.xlane.xlu0 %2009
      %v2011 = vmul.f32 %v2001, %v1571
      %v2012 = vmul.f32 %v2004, %v1571
      %v2013 = vmul.f32 %v2007, %v1571
      %v2014 = vmul.f32 %v2010, %v1571
      %v2015 = vsub.f32 %v1985, %v2011
      %v2016 = vsub.f32 %v1988, %v2012
      %v2017 = vsub.f32 %v1993, %v2013
      %v2018 = vsub.f32 %v1996, %v2014
      %v2019 = vmul.f32 %v2015, %v2015
      %v2020 = vmul.f32 %v2016, %v2016
      %v2021 = vmul.f32 %v2017, %v2017
      %v2022 = vmul.f32 %v2018, %v2018
      %v2023 = vsel %vm449, %v2019, 0.0
      %2024 = vadd.xlane.f32.xlu0 %v2023
      %v2025 = vpop.xlane.xlu0 %2024
      %v2026 = vsel %vm449, %v2020, 0.0
      %2027 = vadd.xlane.f32.xlu0 %v2026
      %v2028 = vpop.xlane.xlu0 %2027
      %v2029 = vsel %vm449, %v2021, 0.0
      %2030 = vadd.xlane.f32.xlu0 %v2029
      %v2031 = vpop.xlane.xlu0 %2030
      %v2032 = vsel %vm449, %v2022, 0.0
      %2033 = vadd.xlane.f32.xlu0 %v2032
      %v2034 = vpop.xlane.xlu0 %2033
      %v2035 = vmul.f32 %v2025, %v1571
      %v2036 = vmul.f32 %v2028, %v1571
      %v2037 = vmul.f32 %v2031, %v1571
      %v2038 = vmul.f32 %v2034, %v1571
      %v2039 = vadd.f32 %v2035, 1e-05
      %v2040 = vadd.f32 %v2036, 1e-05
      %v2041 = vadd.f32 %v2037, 1e-05
      %v2042 = vadd.f32 %v2038, 1e-05
      %v2043 = vrsqrt.pop %v2039
      %v2044 = vrsqrt.pop %v2040
      %v2045 = vrsqrt.pop %v2041
      %v2046 = vrsqrt.pop %v2042
      %v2047 = vmul.f32 %v2015, %v2043
      %v2048 = vmul.f32 %v2016, %v2044
      %v2049 = vmul.f32 %v2017, %v2045
      %v2050 = vmul.f32 %v2018, %v2046
      %v2051 = vmul.f32 %v2047, %v1615
      %v2052 = vmul.f32 %v2048, %v1615
      %v2053 = vmul.f32 %v2049, %v1615
      %v2054 = vmul.f32 %v2050, %v1615
      %v2055 = vadd.f32 %v2051, %v1623
      %v2056 = vadd.f32 %v2052, %v1623
      %v2057 = vadd.f32 %v2053, %v1623
      %v2058 = vadd.f32 %v2054, %v1623
      %v2059 = vsel %vm449, %v2055, 0.0
      %2060 = vadd.xlane.f32.xlu0 %v2059
      %v2061 = vpop.xlane.xlu0 %2060
      %v2062 = vsel %vm449, %v2056, 0.0
      %2063 = vadd.xlane.f32.xlu0 %v2062
      %v2064 = vpop.xlane.xlu0 %2063
      %v2065 = vsel %vm449, %v2057, 0.0
      %2066 = vadd.xlane.f32.xlu0 %v2065
      %v2067 = vpop.xlane.xlu0 %2066
      %v2068 = vsel %vm449, %v2058, 0.0
      %2069 = vadd.xlane.f32.xlu0 %v2068
      %v2070 = vpop.xlane.xlu0 %2069
      %v2071 = vmul.f32 %v2061, %v1571
      %v2072 = vmul.f32 %v2064, %v1571
      %v2073 = vmul.f32 %v2067, %v1571
      %v2074 = vmul.f32 %v2070, %v1571
      %v2075 = vsub.f32 %v2055, %v2071
      %v2076 = vsub.f32 %v2056, %v2072
      %v2077 = vsub.f32 %v2057, %v2073
      %v2078 = vsub.f32 %v2058, %v2074
      %v2079 = vmul.f32 %v2075, %v2075
      %v2080 = vmul.f32 %v2076, %v2076
      %v2081 = vmul.f32 %v2077, %v2077
      %v2082 = vmul.f32 %v2078, %v2078
      %v2083 = vsel %vm449, %v2079, 0.0
      %2084 = vadd.xlane.f32.xlu0 %v2083
      %v2085 = vpop.xlane.xlu0 %2084
      %v2086 = vsel %vm449, %v2080, 0.0
      %2087 = vadd.xlane.f32.xlu0 %v2086
      %v2088 = vpop.xlane.xlu0 %2087
      %v2089 = vsel %vm449, %v2081, 0.0
      %2090 = vadd.xlane.f32.xlu0 %v2089
      %v2091 = vpop.xlane.xlu0 %2090
      %v2092 = vsel %vm449, %v2082, 0.0
      %2093 = vadd.xlane.f32.xlu0 %v2092
      %v2094 = vpop.xlane.xlu0 %2093
      %v2095 = vmul.f32 %v2085, %v1571
      %v2096 = vmul.f32 %v2088, %v1571
      %v2097 = vmul.f32 %v2091, %v1571
      %v2098 = vmul.f32 %v2094, %v1571
      %v2099 = vadd.f32 %v2095, 1e-05
      %v2100 = vadd.f32 %v2096, 1e-05
      %v2101 = vadd.f32 %v2097, 1e-05
      %v2102 = vadd.f32 %v2098, 1e-05
      %v2103 = vrsqrt.pop %v2099
      %v2104 = vrsqrt.pop %v2100
      %v2105 = vrsqrt.pop %v2101
      %v2106 = vrsqrt.pop %v2102
      %v2107 = vmul.f32 %v2075, %v2103
      %v2108 = vmul.f32 %v2076, %v2104
      %v2109 = vmul.f32 %v2077, %v2105
      %v2110 = vmul.f32 %v2078, %v2106
      %v2111 = vmul.f32 %v2107, %v1615
      %v2112 = vmul.f32 %v2108, %v1615
      %v2113 = vmul.f32 %v2109, %v1615
      %v2114 = vmul.f32 %v2110, %v1615
      %v2115 = vadd.f32 %v2111, %v1623
      %v2116 = vadd.f32 %v2112, %v1623
      %v2117 = vadd.f32 %v2113, %v1623
      %v2118 = vadd.f32 %v2114, %v1623
      %s2119 = scalar_lea.vmem %s3, 48
      %v2120 = vld [vmem:[%s2119] sm:$0xf]
      %v2121 = vld [vmem:[%s2119 + $0x4] sm:$0xf]
      %v2122 = vld [vmem:[%s2119 + $0x8] sm:$0xf]
      %v2123 = vld [vmem:[%s2119 + $0xc] sm:$0xf]
      %v2124 = vpack.c.bf16 %v2116, %v2115
      %v2125 = vpack.c.bf16 %v2118, %v2117
      %v2126 = vlaneseq
      %v2127 = vshrl.u32 %v2126, 7
      %v2128 = vsub.s32 6, %v2127
      %v2129 = vrot.slane %v413, %v2128
      %v2134 = vunpack.c.l.b16 %v2120
      %v2135 = vunpack.c.l.b16 %v2121
      %v2136 = vunpack.c.l.b16 %v2122
      %v2137 = vunpack.c.l.b16 %v2123
      %v2138 = vpack.c.b16 %v2135, %v2134
      %v2139 = vpack.c.b16 %v2137, %v2136
      %v2143 = vsel %vm449, %v2124, 0
      %v2146 = vsel %vm449, %v2125, 0
      %2148 = vmatprep.subr.bf16.mxu0 0
      %2149 = vmatpush1.bf16.msra.mxu0 %v2138
      %2150 = vmatprep.subr.bf16.mxu0 0
      %2151 = vmatpush1.bf16.msra.mxu0 %v2139
      %2152 = vmatprep.subr.bf16.mxu0 0
      %2153 = vmatpush1.bf16.msra.mxu0 0
      %2154 = vmatprep.subr.bf16.mxu0 0
      %2155 = vmatpush1.bf16.msra.mxu0 0
      %2156 = vmatprep.subr.bf16.mxu0 0
      %2157 = vmatpush1.bf16.msra.mxu0 0
      %2158 = vmatprep.subr.bf16.mxu0 0
      %2159 = vmatpush1.bf16.msra.mxu0 0
      %2160 = vmatprep.subr.bf16.mxu0 0
      %2161 = vmatpush1.bf16.msra.mxu0 0
      %2162 = vmatprep.subr.bf16.mxu0 0
      %2163 = vmatpush1.bf16.msra.mxu0 0
      %2164 = vmatprep.subr.bf16.mxu0 0
      %2165 = vmatpush1.bf16.msra.mxu0 0
      %2166 = vmatprep.subr.bf16.mxu0 0
      %2167 = vmatpush1.bf16.msra.mxu0 0
      %2168 = vmatprep.subr.bf16.mxu0 0
      %2169 = vmatpush1.bf16.msra.mxu0 0
      %2170 = vmatprep.subr.bf16.mxu0 0
      %2171 = vmatpush1.bf16.msra.mxu0 0
      %2172 = vmatprep.subr.bf16.mxu0 0
      %2173 = vmatpush1.bf16.msra.mxu0 0
      %2174 = vmatprep.subr.bf16.mxu0 0
      %2175 = vmatpush1.bf16.msra.mxu0 0
      %2176 = vmatprep.subr.bf16.mxu0 0
      %2177 = vmatpush1.bf16.msra.mxu0 0
      %2178 = vmatprep.subr.bf16.mxu0 0
      %2179 = vmatpush1.bf16.msra.mxu0 0
      %2180 = vmatprep.mubr.bf16.mxu0 0
      %2181 = vmatmul.mubr.bf16.gmra.mrb[0].mxu0 %v2143
      %v2182 = vpop.f32.mrb[0].mxu0
      %v2183 = vadd.f32 %v2129, %v2182
      %v2184 = vpop.f32.mrb[0].mxu0
      %v2185 = vpop.f32.mrb[0].mxu0
      %v2186 = vadd.f32 %v2129, %v2185
      %v2187 = vpop.f32.mrb[0].mxu0
      %2188 = vmatprep.mubr.bf16.mxu0 0
      %2189 = vmatmul.mubr.bf16.gmra.mrb[0].mxu0 %v2146
      %v2190 = vpop.f32.mrb[0].mxu0
      %v2191 = vadd.f32 %v2129, %v2190
      %v2192 = vpop.f32.mrb[0].mxu0
      %v2193 = vpop.f32.mrb[0].mxu0
      %v2194 = vadd.f32 %v2129, %v2193
      %v2195 = vpop.f32.mrb[0].mxu0
      %2196 = vdwg.mxu0
      %v2197 = vpack.c.bf16 %v2186, %v2183
      %v2198 = vpack.c.bf16 %v2194, %v2191
      %v2200 = vsel %vm449, %v2197, 0
      %v2203 = vsel %vm449, %v2198, 0
      %2205 = vmatprep.subr.bf16.mxu0 %v888
      %2206 = vmatpush1.bf16.msra.mxu0 %v887
      %2207 = vmatprep.subr.bf16.mxu0 %v890
      %2208 = vmatpush1.bf16.msra.mxu0 %v889
      %2209 = vmatprep.subr.bf16.mxu0 0
      %2210 = vmatpush1.bf16.msra.mxu0 0
      %2211 = vmatprep.subr.bf16.mxu0 0
      %2212 = vmatpush1.bf16.msra.mxu0 0
      %2213 = vmatprep.subr.bf16.mxu0 0
      %2214 = vmatpush1.bf16.msra.mxu0 0
      %2215 = vmatprep.subr.bf16.mxu0 0
      %2216 = vmatpush1.bf16.msra.mxu0 0
      %2217 = vmatprep.subr.bf16.mxu0 0
      %2218 = vmatpush1.bf16.msra.mxu0 0
      %2219 = vmatprep.subr.bf16.mxu0 0
      %2220 = vmatpush1.bf16.msra.mxu0 0
      %2221 = vmatprep.subr.bf16.mxu0 0
      %2222 = vmatpush1.bf16.msra.mxu0 0
      %2223 = vmatprep.subr.bf16.mxu0 0
      %2224 = vmatpush1.bf16.msra.mxu0 0
      %2225 = vmatprep.subr.bf16.mxu0 0
      %2226 = vmatpush1.bf16.msra.mxu0 0
      %2227 = vmatprep.subr.bf16.mxu0 0
      %2228 = vmatpush1.bf16.msra.mxu0 0
      %2229 = vmatprep.subr.bf16.mxu0 0
      %2230 = vmatpush1.bf16.msra.mxu0 0
      %2231 = vmatprep.subr.bf16.mxu0 0
      %2232 = vmatpush1.bf16.msra.mxu0 0
      %2233 = vmatprep.subr.bf16.mxu0 0
      %2234 = vmatpush1.bf16.msra.mxu0 0
      %2235 = vmatprep.subr.bf16.mxu0 0
      %2236 = vmatpush1.bf16.msra.mxu0 0
      %2237 = vmatprep.mubr.bf16.mxu0 0
      %2238 = vmatmul.mubr.bf16.gmra.mrb[0].mxu0 %v2200
      %v2239 = vpop.f32.mrb[0].mxu0
      %v2240 = vadd.f32 %v1551, %v2239
      %v2241 = vpop.f32.mrb[0].mxu0
      %v2242 = vadd.f32 %v1552, %v2241
      %v2243 = vpop.f32.mrb[0].mxu0
      %v2244 = vadd.f32 %v1553, %v2243
      %v2245 = vpop.f32.mrb[0].mxu0
      %v2246 = vadd.f32 %v1554, %v2245
      %2247 = vmatprep.mubr.bf16.mxu0 0
      %2248 = vmatmul.mubr.bf16.gmra.mrb[0].mxu0 %v2203
      %v2249 = vpop.f32.mrb[0].mxu0
      %v2250 = vadd.f32 %v1555, %v2249
      %v2251 = vpop.f32.mrb[0].mxu0
      %v2252 = vadd.f32 %v1556, %v2251
      %v2253 = vpop.f32.mrb[0].mxu0
      %v2254 = vadd.f32 %v1557, %v2253
      %v2255 = vpop.f32.mrb[0].mxu0
      %v2256 = vadd.f32 %v1558, %v2255
      %2257 = vdwg.mxu0
      %v2258 = vmax.f32 %v2240, %v2242
      %2259 = vmax.xlane.f32.xlu0 %v2258
      %v2260 = vpop.xlane.xlu0 %2259
      %v2261 = vmax.f32 %v2244, %v2246
      %2262 = vmax.xlane.f32.xlu0 %v2261
      %v2263 = vpop.xlane.xlu0 %2262
      %v2264 = vmax.f32 %v2250, %v2252
      %2265 = vmax.xlane.f32.xlu0 %v2264
      %v2266 = vpop.xlane.xlu0 %2265
      %v2267 = vmax.f32 %v2254, %v2256
      %2268 = vmax.xlane.f32.xlu0 %v2267
      %v2269 = vpop.xlane.xlu0 %2268
      %v2270 = vsub.f32 %v2240, %v2260
      %v2271 = vsub.f32 %v2242, %v2260
      %v2272 = vsub.f32 %v2244, %v2263
      %v2273 = vsub.f32 %v2246, %v2263
      %v2274 = vsub.f32 %v2250, %v2266
      %v2275 = vsub.f32 %v2252, %v2266
      %v2276 = vsub.f32 %v2254, %v2269
      %v2277 = vsub.f32 %v2256, %v2269
      %v2278 = vmul.f32 %v2270, 1.442695
      %v2279 = vpow.pop %v2278
      %v2280 = vmul.f32 %v2271, 1.442695
      %v2281 = vpow.pop %v2280
      %v2282 = vmul.f32 %v2272, 1.442695
      %v2283 = vpow.pop %v2282
      %v2284 = vmul.f32 %v2273, 1.442695
      %v2285 = vpow.pop %v2284
      %v2286 = vmul.f32 %v2274, 1.442695
      %v2287 = vpow.pop %v2286
      %v2288 = vmul.f32 %v2275, 1.442695
      %v2289 = vpow.pop %v2288
      %v2290 = vmul.f32 %v2276, 1.442695
      %v2291 = vpow.pop %v2290
      %v2292 = vmul.f32 %v2277, 1.442695
      %v2293 = vpow.pop %v2292
      %v2294 = vpack.c.bf16 %v2283, %v2279
      %v2295 = vpack.c.bf16 %v2285, %v2281
      %v2296 = vpack.c.bf16 %v2291, %v2287
      %v2297 = vpack.c.bf16 %v2293, %v2289
      %2298 = vmatprep.subr.bf16.mxu0 0
      %2299 = vmatpush1.bf16.msra.mxu0 %v1535
      %2300 = vmatprep.subr.bf16.mxu0 0
      %2301 = vmatpush1.bf16.msra.mxu0 %v1536
      %2302 = vmatprep.subr.bf16.mxu0 0
      %2303 = vmatpush1.bf16.msra.mxu0 %v1537
      %2304 = vmatprep.subr.bf16.mxu0 0
      %2305 = vmatpush1.bf16.msra.mxu0 %v1538
      %2306 = vmatprep.subr.bf16.mxu0 0
      %2307 = vmatpush1.bf16.msra.mxu0 %v1539
      %2308 = vmatprep.subr.bf16.mxu0 0
      %2309 = vmatpush1.bf16.msra.mxu0 %v1540
      %2310 = vmatprep.subr.bf16.mxu0 0
      %2311 = vmatpush1.bf16.msra.mxu0 %v1541
      %2312 = vmatprep.subr.bf16.mxu0 0
      %2313 = vmatpush1.bf16.msra.mxu0 %v1542
      %2314 = vmatprep.subr.bf16.mxu0 0
      %2315 = vmatpush1.bf16.msra.mxu0 %v1543
      %2316 = vmatprep.subr.bf16.mxu0 0
      %2317 = vmatpush1.bf16.msra.mxu0 %v1544
      %2318 = vmatprep.subr.bf16.mxu0 0
      %2319 = vmatpush1.bf16.msra.mxu0 %v1545
      %2320 = vmatprep.subr.bf16.mxu0 0
      %2321 = vmatpush1.bf16.msra.mxu0 %v1546
      %2322 = vmatprep.subr.bf16.mxu0 0
      %2323 = vmatpush1.bf16.msra.mxu0 %v1547
      %2324 = vmatprep.subr.bf16.mxu0 0
      %2325 = vmatpush1.bf16.msra.mxu0 %v1548
      %2326 = vmatprep.subr.bf16.mxu0 0
      %2327 = vmatpush1.bf16.msra.mxu0 %v1549
      %2328 = vmatprep.subr.bf16.mxu0 0
      %2329 = vmatpush1.bf16.msra.mxu0 %v1550
      %2330 = vmatprep.mubr.bf16.mxu0 %v2295
      %2331 = vmatmul.mubr.bf16.gmra.mrb[0].mxu0 %v2294
      %v2332 = vpop.f32.mrb[0].mxu0
      %v2333 = vadd.f32 0.0, %v2332
      %v2334 = vpop.f32.mrb[0].mxu0
      %v2335 = vpop.f32.mrb[0].mxu0
      %v2336 = vadd.f32 0.0, %v2335
      %v2337 = vpop.f32.mrb[0].mxu0
      %2338 = vmatprep.mubr.bf16.mxu0 %v2297
      %2339 = vmatmul.mubr.bf16.gmra.mrb[0].mxu0 %v2296
      %v2340 = vpop.f32.mrb[0].mxu0
      %v2341 = vadd.f32 0.0, %v2340
      %v2342 = vpop.f32.mrb[0].mxu0
      %v2343 = vpop.f32.mrb[0].mxu0
      %v2344 = vadd.f32 0.0, %v2343
      %v2345 = vpop.f32.mrb[0].mxu0
      %2346 = vdwg.mxu0
      %2363 = vrot.lane.b32.xlu0 %v1519, 96
      %v2364 = vpop.permute.xlu0 %2363
      %2365 = vrot.lane.b32.xlu0 %v1520, 96
      %v2366 = vpop.permute.xlu0 %2365
      %2367 = vrot.lane.b32.xlu0 %v1521, 96
      %v2368 = vpop.permute.xlu0 %2367
      %2369 = vrot.lane.b32.xlu0 %v1522, 96
      %v2370 = vpop.permute.xlu0 %2369
      %2371 = vrot.lane.b32.xlu0 %v1523, 96
      %v2372 = vpop.permute.xlu0 %2371
      %2373 = vrot.lane.b32.xlu0 %v1524, 96
      %v2374 = vpop.permute.xlu0 %2373
      %2375 = vrot.lane.b32.xlu0 %v1525, 96
      %v2376 = vpop.permute.xlu0 %2375
      %2377 = vrot.lane.b32.xlu0 %v1526, 96
      %v2378 = vpop.permute.xlu0 %2377
      %2379 = vrot.lane.b32.xlu0 %v1527, 96
      %v2380 = vpop.permute.xlu0 %2379
      %2381 = vrot.lane.b32.xlu0 %v1528, 96
      %v2382 = vpop.permute.xlu0 %2381
      %2383 = vrot.lane.b32.xlu0 %v1529, 96
      %v2384 = vpop.permute.xlu0 %2383
      %2385 = vrot.lane.b32.xlu0 %v1530, 96
      %v2386 = vpop.permute.xlu0 %2385
      %2387 = vrot.lane.b32.xlu0 %v1531, 96
      %v2388 = vpop.permute.xlu0 %2387
      %2389 = vrot.lane.b32.xlu0 %v1532, 96
      %v2390 = vpop.permute.xlu0 %2389
      %2391 = vrot.lane.b32.xlu0 %v1533, 96
      %v2392 = vpop.permute.xlu0 %2391
      %2393 = vrot.lane.b32.xlu0 %v1534, 96
      %v2394 = vpop.permute.xlu0 %2393
      %2411 = vmatprep.subr.bf16.mxu0 0
      %2412 = vmatpush1.bf16.msra.mxu0 %v2364
      %2413 = vmatprep.subr.bf16.mxu0 0
      %2414 = vmatpush1.bf16.msra.mxu0 %v2366
      %2415 = vmatprep.subr.bf16.mxu0 0
      %2416 = vmatpush1.bf16.msra.mxu0 %v2368
      %2417 = vmatprep.subr.bf16.mxu0 0
      %2418 = vmatpush1.bf16.msra.mxu0 %v2370
      %2419 = vmatprep.subr.bf16.mxu0 0
      %2420 = vmatpush1.bf16.msra.mxu0 %v2372
      %2421 = vmatprep.subr.bf16.mxu0 0
      %2422 = vmatpush1.bf16.msra.mxu0 %v2374
      %2423 = vmatprep.subr.bf16.mxu0 0
      %2424 = vmatpush1.bf16.msra.mxu0 %v2376
      %2425 = vmatprep.subr.bf16.mxu0 0
      %2426 = vmatpush1.bf16.msra.mxu0 %v2378
      %2427 = vmatprep.subr.bf16.mxu0 0
      %2428 = vmatpush1.bf16.msra.mxu0 %v2380
      %2429 = vmatprep.subr.bf16.mxu0 0
      %2430 = vmatpush1.bf16.msra.mxu0 %v2382
      %2431 = vmatprep.subr.bf16.mxu0 0
      %2432 = vmatpush1.bf16.msra.mxu0 %v2384
      %2433 = vmatprep.subr.bf16.mxu0 0
      %2434 = vmatpush1.bf16.msra.mxu0 %v2386
      %2435 = vmatprep.subr.bf16.mxu0 0
      %2436 = vmatpush1.bf16.msra.mxu0 %v2388
      %2437 = vmatprep.subr.bf16.mxu0 0
      %2438 = vmatpush1.bf16.msra.mxu0 %v2390
      %2439 = vmatprep.subr.bf16.mxu0 0
      %2440 = vmatpush1.bf16.msra.mxu0 %v2392
      %2441 = vmatprep.subr.bf16.mxu0 0
      %2442 = vmatpush1.bf16.msra.mxu0 %v2394
      %2443 = vmatprep.mubr.bf16.mxu0 %v2295
      %2444 = vmatmul.mubr.bf16.gmra.mrb[0].mxu0 %v2294
      %v2445 = vpop.f32.mrb[0].mxu0
      %v2446 = vadd.f32 0.0, %v2445
      %v2447 = vpop.f32.mrb[0].mxu0
      %v2448 = vpop.f32.mrb[0].mxu0
      %v2449 = vadd.f32 0.0, %v2448
      %v2450 = vpop.f32.mrb[0].mxu0
      %2451 = vmatprep.mubr.bf16.mxu0 %v2297
      %2452 = vmatmul.mubr.bf16.gmra.mrb[0].mxu0 %v2296
      %v2453 = vpop.f32.mrb[0].mxu0
      %v2454 = vadd.f32 0.0, %v2453
      %v2455 = vpop.f32.mrb[0].mxu0
      %v2456 = vpop.f32.mrb[0].mxu0
      %v2457 = vadd.f32 0.0, %v2456
      %v2458 = vpop.f32.mrb[0].mxu0
      %2459 = vdwg.mxu0
      %v2460 = vrcp.pop %v2333
      %v2461 = vmul.f32 %v2446, %v2460
      %v2462 = vrcp.pop %v2336
      %v2463 = vmul.f32 %v2449, %v2462
      %v2464 = vrcp.pop %v2341
      %v2465 = vmul.f32 %v2454, %v2464
      %v2466 = vrcp.pop %v2344
      %v2467 = vmul.f32 %v2457, %v2466
      %v2468 = vlaneseq
      %v2469 = vshrl.u32 %v2468, 7
      %v2470 = vsub.s32 0, %v2469
      %v2471 = vrot.slane %v414, %v2470
      %v2472 = vadd.f32 %v2461, %v2471
      %v2473 = vadd.f32 %v2463, %v2471
      %v2474 = vadd.f32 %v2465, %v2471
      %v2475 = vadd.f32 %v2467, %v2471
      %s2476 = scalar_lea.vmem %s3, 80
      %v2477 = vld [vmem:[%s2476] sm:$0xf]
      %v2478 = vld [vmem:[%s2476 + $0x4] sm:$0xf]
      %v2479 = vld [vmem:[%s2476 + $0x8] sm:$0xf]
      %v2480 = vld [vmem:[%s2476 + $0xc] sm:$0xf]
      %v2481 = vpack.c.bf16 %v2473, %v2472
      %v2482 = vpack.c.bf16 %v2475, %v2474
      %v2483 = vlaneseq
      %v2484 = vshrl.u32 %v2483, 7
      %v2485 = vsub.s32 2, %v2484
      %v2486 = vrot.slane %v414, %v2485
      %v2491 = vunpack.c.l.b16 %v2477
      %v2492 = vunpack.c.l.b16 %v2478
      %v2493 = vunpack.c.l.b16 %v2479
      %v2494 = vunpack.c.l.b16 %v2480
      %v2495 = vpack.c.b16 %v2492, %v2491
      %v2496 = vpack.c.b16 %v2494, %v2493
      %v2500 = vsel %vm449, %v2481, 0
      %v2503 = vsel %vm449, %v2482, 0
      %2505 = vmatprep.subr.bf16.mxu0 0
      %2506 = vmatpush1.bf16.msra.mxu0 %v2495
      %2507 = vmatprep.subr.bf16.mxu0 0
      %2508 = vmatpush1.bf16.msra.mxu0 %v2496
      %2509 = vmatprep.subr.bf16.mxu0 0
      %2510 = vmatpush1.bf16.msra.mxu0 0
      %2511 = vmatprep.subr.bf16.mxu0 0
      %2512 = vmatpush1.bf16.msra.mxu0 0
      %2513 = vmatprep.subr.bf16.mxu0 0
      %2514 = vmatpush1.bf16.msra.mxu0 0
      %2515 = vmatprep.subr.bf16.mxu0 0
      %2516 = vmatpush1.bf16.msra.mxu0 0
      %2517 = vmatprep.subr.bf16.mxu0 0
      %2518 = vmatpush1.bf16.msra.mxu0 0
      %2519 = vmatprep.subr.bf16.mxu0 0
      %2520 = vmatpush1.bf16.msra.mxu0 0
      %2521 = vmatprep.subr.bf16.mxu0 0
      %2522 = vmatpush1.bf16.msra.mxu0 0
      %2523 = vmatprep.subr.bf16.mxu0 0
      %2524 = vmatpush1.bf16.msra.mxu0 0
      %2525 = vmatprep.subr.bf16.mxu0 0
      %2526 = vmatpush1.bf16.msra.mxu0 0
      %2527 = vmatprep.subr.bf16.mxu0 0
      %2528 = vmatpush1.bf16.msra.mxu0 0
      %2529 = vmatprep.subr.bf16.mxu0 0
      %2530 = vmatpush1.bf16.msra.mxu0 0
      %2531 = vmatprep.subr.bf16.mxu0 0
      %2532 = vmatpush1.bf16.msra.mxu0 0
      %2533 = vmatprep.subr.bf16.mxu0 0
      %2534 = vmatpush1.bf16.msra.mxu0 0
      %2535 = vmatprep.subr.bf16.mxu0 0
      %2536 = vmatpush1.bf16.msra.mxu0 0
      %2537 = vmatprep.mubr.bf16.mxu0 0
      %2538 = vmatmul.mubr.bf16.gmra.mrb[0].mxu0 %v2500
      %v2539 = vpop.f32.mrb[0].mxu0
      %v2540 = vadd.f32 %v2486, %v2539
      %v2541 = vpop.f32.mrb[0].mxu0
      %v2542 = vpop.f32.mrb[0].mxu0
      %v2543 = vadd.f32 %v2486, %v2542
      %v2544 = vpop.f32.mrb[0].mxu0
      %2545 = vmatprep.mubr.bf16.mxu0 0
      %2546 = vmatmul.mubr.bf16.gmra.mrb[0].mxu0 %v2503
      %v2547 = vpop.f32.mrb[0].mxu0
      %v2548 = vadd.f32 %v2486, %v2547
      %v2549 = vpop.f32.mrb[0].mxu0
      %v2550 = vpop.f32.mrb[0].mxu0
      %v2551 = vadd.f32 %v2486, %v2550
      %v2552 = vpop.f32.mrb[0].mxu0
      %2553 = vdwg.mxu0
      %v2554 = vsel %vm449, %v2540, 0.0
      %2555 = vadd.xlane.f32.xlu0 %v2554
      %v2556 = vpop.xlane.xlu0 %2555
      %v2557 = vsel %vm449, %v2543, 0.0
      %2558 = vadd.xlane.f32.xlu0 %v2557
      %v2559 = vpop.xlane.xlu0 %2558
      %v2560 = vsel %vm449, %v2548, 0.0
      %2561 = vadd.xlane.f32.xlu0 %v2560
      %v2562 = vpop.xlane.xlu0 %2561
      %v2563 = vsel %vm449, %v2551, 0.0
      %2564 = vadd.xlane.f32.xlu0 %v2563
      %v2565 = vpop.xlane.xlu0 %2564
      %v2566 = vmul.f32 %v2556, %v1571
      %v2567 = vmul.f32 %v2559, %v1571
      %v2568 = vmul.f32 %v2562, %v1571
      %v2569 = vmul.f32 %v2565, %v1571
      %v2570 = vsub.f32 %v2540, %v2566
      %v2571 = vsub.f32 %v2543, %v2567
      %v2572 = vsub.f32 %v2548, %v2568
      %v2573 = vsub.f32 %v2551, %v2569
      %v2574 = vmul.f32 %v2570, %v2570
      %v2575 = vmul.f32 %v2571, %v2571
      %v2576 = vmul.f32 %v2572, %v2572
      %v2577 = vmul.f32 %v2573, %v2573
      %v2578 = vsel %vm449, %v2574, 0.0
      %2579 = vadd.xlane.f32.xlu0 %v2578
      %v2580 = vpop.xlane.xlu0 %2579
      %v2581 = vsel %vm449, %v2575, 0.0
      %2582 = vadd.xlane.f32.xlu0 %v2581
      %v2583 = vpop.xlane.xlu0 %2582
      %v2584 = vsel %vm449, %v2576, 0.0
      %2585 = vadd.xlane.f32.xlu0 %v2584
      %v2586 = vpop.xlane.xlu0 %2585
      %v2587 = vsel %vm449, %v2577, 0.0
      %2588 = vadd.xlane.f32.xlu0 %v2587
      %v2589 = vpop.xlane.xlu0 %2588
      %v2590 = vmul.f32 %v2580, %v1571
      %v2591 = vmul.f32 %v2583, %v1571
      %v2592 = vmul.f32 %v2586, %v1571
      %v2593 = vmul.f32 %v2589, %v1571
      %v2594 = vadd.f32 %v2590, 1e-05
      %v2595 = vadd.f32 %v2591, 1e-05
      %v2596 = vadd.f32 %v2592, 1e-05
      %v2597 = vadd.f32 %v2593, 1e-05
      %v2598 = vrsqrt.pop %v2594
      %v2599 = vrsqrt.pop %v2595
      %v2600 = vrsqrt.pop %v2596
      %v2601 = vrsqrt.pop %v2597
      %v2602 = vmul.f32 %v2570, %v2598
      %v2603 = vmul.f32 %v2571, %v2599
      %v2604 = vmul.f32 %v2572, %v2600
      %v2605 = vmul.f32 %v2573, %v2601
      %v2606 = vmul.f32 %v2602, %v1615
      %v2607 = vmul.f32 %v2603, %v1615
      %v2608 = vmul.f32 %v2604, %v1615
      %v2609 = vmul.f32 %v2605, %v1615
      %v2610 = vadd.f32 %v2606, %v1623
      %v2611 = vadd.f32 %v2607, %v1623
      %v2612 = vadd.f32 %v2608, %v1623
      %v2613 = vadd.f32 %v2609, %v1623
      %2614 = vst.msk [vmem:[%s410] sm:$0xff] %vm449, %v2610
      %2615 = vst.msk [vmem:[%s410 + $0x8] sm:$0xff] %vm449, %v2611
      %2616 = vst.msk [vmem:[%s410 + $0x10] sm:$0xff] %vm449, %v2612
      %2617 = vst.msk [vmem:[%s410 + $0x18] sm:$0xff] %vm449, %v2613
      %s2618 = smul.u32 4, %s22
      %p2619 = scmp.lt.s32.totalorder %s2618, 7
      %s2620 = scalar_select %p2619, %s2618, 7
      %s2621 = smul.addr %s2620, 8
      %s2622 = scalar_lea.vmem %s11, %s2621
      // Predicated region
      $region65: #{tpu_custom_call.1} parent=63 // pred_check
        %p2623 = pneg %p281
      $region66: #{tpu_custom_call.1} parent=63 // pred_check_branch
        %2625 = sbr.rel (%p2623) target = $region68
      $region67: #{tpu_custom_call.1} parent=63 // pred_region
        %s2626 = smul.u32 4, %s22
      $region68: #{tpu_custom_call.1} parent=63 // pred_fallthru
        _
    $region64: #{tpu_custom_call.1} parent=5 // pred_fallthru
      _
    %p2627 = scmp.le.s32.totalorder 2, %s17
    // Predicated region
    $region69: #{tpu_custom_call.1} parent=5 // pred_check
      %p2628 = pneg %p2627
    $region70: #{tpu_custom_call.1} parent=5 // pred_check_branch
      %2630 = sbr.rel (%p2628) target = $region72
    $region71: #{tpu_custom_call.1} parent=5 // pred_region
      %s2631 = ssub.s32 %s17, 2
      // Predicated region
      $region73: #{tpu_custom_call.1} parent=71 // pred_check
        %p2632 = pneg %p287
      $region74: #{tpu_custom_call.1} parent=71 // pred_check_branch
        %2634 = sbr.rel (%p2632) target = $region76
      $region75: #{tpu_custom_call.1} parent=71 // pred_region
        %s2635 = smul.u32 4, %s23
        %p2636 = scmp.lt.s32.totalorder %s2635, 7
        %s2637 = scalar_select %p2636, %s2635, 7
        %s2638 = smul.addr %s2637, 8
        %s2639 = scalar_lea.vmem %s11, %s2638
      $region76: #{tpu_custom_call.1} parent=71 // pred_fallthru
        _
    $region72: #{tpu_custom_call.1} parent=5 // pred_fallthru
      _
  $region6: #{tpu_custom_call.1} parent=0 // loop_footer
    %s21 = sadd.s32 1, %s17
  $region7: #{tpu_custom_call.1} parent=0 // loop_footer_branch
    %16 = sbr.rel target = $region3
  $region8: #{tpu_custom_call.1} parent=0 // loop_exit
    _

</llo_original>
